<compile_context>
chip_gen: v6e
topology: v6e:2x2x1
jax: 0.10.0
libtpu: 0.0.40
codegen_flags: <defaults>
</compile_context>

<pallas_src>
import jax
import jax.numpy as jnp
from jax.experimental import pallas as pl
from jax.experimental.pallas import tpu as pltpu

IMG_C = 4          # input image channels
IMG_HW = 16        # input spatial size
BACKBONE_C = 16    # last_conv_dim of the synthetic backbone
DOWN_C = 32        # downsample_dim
FC_DIM = 64        # fc_dim
NUM_OUT = 6        # affine params (predict_dimension=False)
NUM_OUT_PAD = 8    # lane-padded kernel output; wrapper slices back to 6
FEAT_HW = 8        # backbone output spatial (16 -> stride-2 conv -> 8)
POOL_HW = 4        # last_spatial_dim after MaxPool2d(3, stride=2, pad=1)
K_PATCH = 9 * IMG_C

# TODO(synk): get_backbone() is external/unspecified; a synthetic 3x3 stride-2
# conv + ReLU backbone with last_conv_dim=16 is used in its place.


def _affine_localizer_kernel(patches_ref, wbk_ref, bbk_ref, w1_ref, b1_ref,
                             wfc1_ref, bfc1_ref, wfc2_ref, bfc2_ref, out_ref):
    _, bt, k = patches_ref.shape                               # (64, BT, 36)

    # ---- synthetic backbone: 3x3 stride-2 conv (im2col matmul) + ReLU ----
    patches = patches_ref[...].reshape(FEAT_HW * FEAT_HW * bt, k)
    feat = jnp.dot(patches, wbk_ref[...], preferred_element_type=jnp.float32)
    feat = jnp.maximum(feat + bbk_ref[...], 0.0)               # (64*BT, 16)

    # ---- down_sampler: Conv2d 1x1 + ReLU ----
    down = jnp.dot(feat, w1_ref[...], preferred_element_type=jnp.float32)
    down = jnp.maximum(down + b1_ref[...], 0.0)                # (64*BT, 32)

    # ---- MaxPool2d(kernel_size=3, stride=2, padding=1): 8x8 -> 4x4 ----
    # Rows are ordered (h, w, b), so after this reshape both spatial dims are
    # leading dims and the separable 3-tap max is just leading-axis shifts +
    # elementwise maxima (no sublane/lane slicing).  Zero edge fill is
    # equivalent to -inf padding because the ReLU output is >= 0.
    d4 = down.reshape(FEAT_HW, FEAT_HW, bt, DOWN_C)            # (h, w, b, c)

    zw = jnp.zeros_like(d4[:, :1])
    wmax = jnp.maximum(
        d4,
        jnp.maximum(jnp.concatenate([zw, d4[:, :-1]], axis=1),
                    jnp.concatenate([d4[:, 1:], zw], axis=1)))
    zh = jnp.zeros_like(wmax[:1])
    pooled = jnp.maximum(
        wmax,
        jnp.maximum(jnp.concatenate([zh, wmax[:-1]], axis=0),
                    jnp.concatenate([wmax[1:], zh], axis=0)))
    # pooled[2i, 2j, :, :] is the MaxPool output at spatial position (i, j).

    # ---- fc_loc: Dropout(0.3) is identity at inference -> Linear -> ReLU -> Linear ----
    pe = jnp.stack([pooled[2 * i, 2 * j]
                    for i in range(POOL_HW) for j in range(POOL_HW)], axis=0)   # (16, BT, 32)
    part = jnp.einsum('pbc,pcf->pbf', pe, wfc1_ref[...],
                      preferred_element_type=jnp.float32)                       # (16, BT, 64)
    h1 = jnp.maximum(jnp.sum(part, axis=0) + bfc1_ref[...], 0.0)                # (BT, 64)
    theta = jnp.dot(h1, wfc2_ref[...], preferred_element_type=jnp.float32) + bfc2_ref[...]
    out_ref[...] = theta                                                        # (BT, 8)


def _im2col_stride2_3x3(x_nhwc):
    """(B, 16, 16, C) -> (B, 64, 9*C) patches for a 3x3, stride-2, pad-1 conv."""
    B = x_nhwc.shape[0]
    xp = jnp.pad(x_nhwc, ((0, 0), (1, 1), (1, 1), (0, 0)))
    cols = []
    for kh in range(3):
        for kw in range(3):
            cols.append(xp[:, kh:kh + 2 * FEAT_HW - 1:2, kw:kw + 2 * FEAT_HW - 1:2, :])
    patches = jnp.concatenate(cols, axis=-1)                   # (B, 8, 8, 9C)
    return patches.reshape(B, FEAT_HW * FEAT_HW, 9 * IMG_C)


@jax.jit
def affine_localizer_forward(x_nchw, params):
    wbk, bbk, w1, b1, wfc1, bfc1, wfc2, bfc2 = params
    B = x_nchw.shape[0]

    # Batch tile: multiple of 8 (clean sublane tiling), big enough to fill the
    # MXU M dim (64*BT >= 512), capped at 64 so larger batches keep >= 2
    # parallel grid steps (v7x has 2 TensorCores).
    half = -(-B // 2)
    bt = min(64, max(8, -(-half // 8) * 8))
    b_pad = -(-B // bt) * bt

    x_nhwc = jnp.transpose(x_nchw, (0, 2, 3, 1)).astype(jnp.float32)   # NCHW -> NHWC
    patches = _im2col_stride2_3x3(x_nhwc)                              # (B, 64, 36)
    patches = jnp.pad(patches, ((0, b_pad - B), (0, 0), (0, 0)))
    patches = jnp.transpose(patches, (1, 0, 2))                        # (64, B_pad, 36)

    def full_spec(a):
        n = a.ndim
        return pl.BlockSpec(a.shape, lambda g, n=n: (0,) * n)

    theta = pl.pallas_call(
        _affine_localizer_kernel,
        out_shape=jax.ShapeDtypeStruct((b_pad, NUM_OUT_PAD), jnp.float32),
        grid=(b_pad // bt,),
        in_specs=[
            pl.BlockSpec((FEAT_HW * FEAT_HW, bt, K_PATCH), lambda g: (0, g, 0)),
            full_spec(wbk), full_spec(bbk), full_spec(w1), full_spec(b1),
            full_spec(wfc1), full_spec(bfc1), full_spec(wfc2), full_spec(bfc2),
        ],
        out_specs=pl.BlockSpec((bt, NUM_OUT_PAD), lambda g: (g, 0)),
        compiler_params=pltpu.CompilerParams(dimension_semantics=("parallel",)),
    )(patches, wbk, bbk, w1, b1, wfc1, bfc1, wfc2, bfc2)

    theta = theta[:B, :NUM_OUT].reshape(B, 2, 3)
    return theta, None  # predict_dimension=False


def init_params(key):
    ks = jax.random.split(key, 6)
    wbk = jax.random.normal(ks[0], (K_PATCH, BACKBONE_C), jnp.float32) * 0.1
    bbk = jax.random.normal(ks[1], (1, BACKBONE_C), jnp.float32) * 0.01
    w1 = jax.random.normal(ks[2], (BACKBONE_C, DOWN_C), jnp.float32) * 0.1
    b1 = jax.random.normal(ks[3], (1, DOWN_C), jnp.float32) * 0.01
    # fc1 weight indexed as (pooled_position = i*4 + j, channel, out): a row
    # permutation of PyTorch's (C*4*4) flatten — equivalent for synthetic weights.
    wfc1 = jax.random.normal(ks[4], (POOL_HW * POOL_HW, DOWN_C, FC_DIM), jnp.float32) * 0.05
    bfc1 = jax.random.normal(ks[5], (1, FC_DIM), jnp.float32) * 0.01
    # AffineLocalizer.__init__: last Linear has zero weights, identity-affine
    # bias (padded to 8 lanes; wrapper slices back to 6).
    wfc2 = jnp.zeros((FC_DIM, NUM_OUT_PAD), jnp.float32)
    bfc2 = jnp.array([[1.0, 0.0, 0.0, 0.0, 1.0, 0.0, 0.0, 0.0]], jnp.float32)
    return (wbk, bbk, w1, b1, wfc1, bfc1, wfc2, bfc2)


if __name__ == "__main__":
    key = jax.random.PRNGKey(0)
    k_x, k_p = jax.random.split(key)
    x = jax.random.normal(k_x, (2, IMG_C, IMG_HW, IMG_HW), jnp.float32)
    params = init_params(k_p)

    theta, dim = affine_localizer_forward(x, params)
    theta = jax.block_until_ready(theta)

    # The last Linear is zero-initialized with identity-affine bias, so every
    # sample must produce the identity affine transform.
    expected = jnp.broadcast_to(
        jnp.array([[1.0, 0.0, 0.0], [0.0, 1.0, 0.0]], jnp.float32), theta.shape)
    assert theta.shape == (2, 2, 3)
    assert dim is None
    assert jnp.allclose(theta, expected, atol=1e-5)
    print("KERNEL_OK")
</pallas_src>

<mosaic_0001>
module attributes {stable_mosaic.version = 11 : i64} {
  func.func @_affine_localizer_kernel(%arg0: i32, %arg1: memref<64x8x36xf32, #tpu.memory_space<vmem>>, %arg2: memref<36x16xf32, #tpu.memory_space<vmem>>, %arg3: memref<1x16xf32, #tpu.memory_space<vmem>>, %arg4: memref<16x32xf32, #tpu.memory_space<vmem>>, %arg5: memref<1x32xf32, #tpu.memory_space<vmem>>, %arg6: memref<16x32x64xf32, #tpu.memory_space<vmem>>, %arg7: memref<1x64xf32, #tpu.memory_space<vmem>>, %arg8: memref<64x8xf32, #tpu.memory_space<vmem>>, %arg9: memref<1x8xf32, #tpu.memory_space<vmem>>, %arg10: memref<8x8xf32, #tpu.memory_space<vmem>>) attributes {dimension_semantics = [#tpu.dimension_semantics<parallel>], iteration_bounds = array<i64: 1>, scalar_prefetch = 0 : i64, scratch_operands = 0 : i64, tpu.core_type = #tpu.core_type<tc>, window_params = [{transform_indices = @transform_0, window_bounds = array<i64: 64, 8, 36>}, {pipeline_mode = #tpu.pipeline_mode<synchronous>, transform_indices = @transform_1, window_bounds = array<i64: 36, 16>}, {pipeline_mode = #tpu.pipeline_mode<synchronous>, transform_indices = @transform_2, window_bounds = array<i64: 1, 16>}, {pipeline_mode = #tpu.pipeline_mode<synchronous>, transform_indices = @transform_3, window_bounds = array<i64: 16, 32>}, {pipeline_mode = #tpu.pipeline_mode<synchronous>, transform_indices = @transform_4, window_bounds = array<i64: 1, 32>}, {pipeline_mode = #tpu.pipeline_mode<synchronous>, transform_indices = @transform_5, window_bounds = array<i64: 16, 32, 64>}, {pipeline_mode = #tpu.pipeline_mode<synchronous>, transform_indices = @transform_6, window_bounds = array<i64: 1, 64>}, {pipeline_mode = #tpu.pipeline_mode<synchronous>, transform_indices = @transform_7, window_bounds = array<i64: 64, 8>}, {pipeline_mode = #tpu.pipeline_mode<synchronous>, transform_indices = @transform_8, window_bounds = array<i64: 1, 8>}, {transform_indices = @transform_9, window_bounds = array<i64: 8, 8>}]} {
    %c0 = arith.constant 0 : index
    %c0_0 = arith.constant 0 : index
    %c0_1 = arith.constant 0 : index
    %0 = vector.load %arg1[%c0, %c0_0, %c0_1] : memref<64x8x36xf32, #tpu.memory_space<vmem>>, vector<64x8x36xf32>
    %1 = vector.shape_cast %0 : vector<64x8x36xf32> to vector<512x36xf32>
    %c0_2 = arith.constant 0 : index
    %c0_3 = arith.constant 0 : index
    %2 = vector.load %arg2[%c0_2, %c0_3] : memref<36x16xf32, #tpu.memory_space<vmem>>, vector<36x16xf32>
    %cst = arith.constant dense<0.000000e+00> : vector<512x16xf32>
    %3 = tpu.matmul %1, %2, %cst {dimension_numbers = #tpu.dot_dimension_numbers<[1], [0], [0], [1], [0, 0, 1, 1], [], []>} : vector<512x36xf32>, vector<36x16xf32>, vector<512x16xf32> -> vector<512x16xf32>
    %c0_4 = arith.constant 0 : index
    %c0_5 = arith.constant 0 : index
    %4 = vector.load %arg3[%c0_4, %c0_5] : memref<1x16xf32, #tpu.memory_space<vmem>>, vector<1x16xf32>
    %5 = vector.broadcast %4 : vector<1x16xf32> to vector<512x16xf32>
    %6 = arith.addf %3, %5 : vector<512x16xf32>
    %cst_6 = arith.constant 0.000000e+00 : f32
    %7 = vector.broadcast %cst_6 : f32 to vector<512x16xf32>
    %8 = arith.maximumf %6, %7 : vector<512x16xf32>
    %c0_7 = arith.constant 0 : index
    %c0_8 = arith.constant 0 : index
    %9 = vector.load %arg4[%c0_7, %c0_8] : memref<16x32xf32, #tpu.memory_space<vmem>>, vector<16x32xf32>
    %cst_9 = arith.constant dense<0.000000e+00> : vector<512x32xf32>
    %10 = tpu.matmul %8, %9, %cst_9 {dimension_numbers = #tpu.dot_dimension_numbers<[1], [0], [0], [1], [0, 0, 1, 1], [], []>} : vector<512x16xf32>, vector<16x32xf32>, vector<512x32xf32> -> vector<512x32xf32>
    %c0_10 = arith.constant 0 : index
    %c0_11 = arith.constant 0 : index
    %11 = vector.load %arg5[%c0_10, %c0_11] : memref<1x32xf32, #tpu.memory_space<vmem>>, vector<1x32xf32>
    %12 = vector.broadcast %11 : vector<1x32xf32> to vector<512x32xf32>
    %13 = arith.addf %10, %12 : vector<512x32xf32>
    %cst_12 = arith.constant 0.000000e+00 : f32
    %14 = vector.broadcast %cst_12 : f32 to vector<512x32xf32>
    %15 = arith.maximumf %13, %14 : vector<512x32xf32>
    %16 = vector.shape_cast %15 : vector<512x32xf32> to vector<8x8x8x32xf32>
    %cst_13 = arith.constant 0.000000e+00 : f32
    %17 = vector.broadcast %cst_13 : f32 to vector<8x1x8x32xf32>
    %18 = vector.extract_strided_slice %16 {offsets = [0, 0, 0, 0], sizes = [8, 7, 8, 32], strides = [1, 1, 1, 1]} : vector<8x8x8x32xf32> to vector<8x7x8x32xf32>
    %19 = tpu.concatenate %17, %18 in 1 : vector<8x1x8x32xf32>, vector<8x7x8x32xf32> -> vector<8x8x8x32xf32>
    %20 = vector.extract_strided_slice %16 {offsets = [0, 1, 0, 0], sizes = [8, 7, 8, 32], strides = [1, 1, 1, 1]} : vector<8x8x8x32xf32> to vector<8x7x8x32xf32>
    %21 = tpu.concatenate %20, %17 in 1 : vector<8x7x8x32xf32>, vector<8x1x8x32xf32> -> vector<8x8x8x32xf32>
    %22 = arith.maximumf %19, %21 : vector<8x8x8x32xf32>
    %23 = arith.maximumf %16, %22 : vector<8x8x8x32xf32>
    %cst_14 = arith.constant 0.000000e+00 : f32
    %24 = vector.broadcast %cst_14 : f32 to vector<1x8x8x32xf32>
    %25 = vector.extract_strided_slice %23 {offsets = [0, 0, 0, 0], sizes = [7, 8, 8, 32], strides = [1, 1, 1, 1]} : vector<8x8x8x32xf32> to vector<7x8x8x32xf32>
    %26 = tpu.concatenate %24, %25 in 0 : vector<1x8x8x32xf32>, vector<7x8x8x32xf32> -> vector<8x8x8x32xf32>
    %27 = vector.extract_strided_slice %23 {offsets = [1, 0, 0, 0], sizes = [7, 8, 8, 32], strides = [1, 1, 1, 1]} : vector<8x8x8x32xf32> to vector<7x8x8x32xf32>
    %28 = tpu.concatenate %27, %24 in 0 : vector<7x8x8x32xf32>, vector<1x8x8x32xf32> -> vector<8x8x8x32xf32>
    %29 = arith.maximumf %26, %28 : vector<8x8x8x32xf32>
    %30 = arith.maximumf %23, %29 : vector<8x8x8x32xf32>
    %31 = vector.extract_strided_slice %30 {offsets = [0, 0, 0, 0], sizes = [1, 1, 8, 32], strides = [1, 1, 1, 1]} : vector<8x8x8x32xf32> to vector<1x1x8x32xf32>
    %32 = vector.shape_cast %31 : vector<1x1x8x32xf32> to vector<8x32xf32>
    %33 = vector.extract_strided_slice %30 {offsets = [0, 2, 0, 0], sizes = [1, 1, 8, 32], strides = [1, 1, 1, 1]} : vector<8x8x8x32xf32> to vector<1x1x8x32xf32>
    %34 = vector.shape_cast %33 : vector<1x1x8x32xf32> to vector<8x32xf32>
    %35 = vector.extract_strided_slice %30 {offsets = [0, 4, 0, 0], sizes = [1, 1, 8, 32], strides = [1, 1, 1, 1]} : vector<8x8x8x32xf32> to vector<1x1x8x32xf32>
    %36 = vector.shape_cast %35 : vector<1x1x8x32xf32> to vector<8x32xf32>
    %37 = vector.extract_strided_slice %30 {offsets = [0, 6, 0, 0], sizes = [1, 1, 8, 32], strides = [1, 1, 1, 1]} : vector<8x8x8x32xf32> to vector<1x1x8x32xf32>
    %38 = vector.shape_cast %37 : vector<1x1x8x32xf32> to vector<8x32xf32>
    %39 = vector.extract_strided_slice %30 {offsets = [2, 0, 0, 0], sizes = [1, 1, 8, 32], strides = [1, 1, 1, 1]} : vector<8x8x8x32xf32> to vector<1x1x8x32xf32>
    %40 = vector.shape_cast %39 : vector<1x1x8x32xf32> to vector<8x32xf32>
    %41 = vector.extract_strided_slice %30 {offsets = [2, 2, 0, 0], sizes = [1, 1, 8, 32], strides = [1, 1, 1, 1]} : vector<8x8x8x32xf32> to vector<1x1x8x32xf32>
    %42 = vector.shape_cast %41 : vector<1x1x8x32xf32> to vector<8x32xf32>
    %43 = vector.extract_strided_slice %30 {offsets = [2, 4, 0, 0], sizes = [1, 1, 8, 32], strides = [1, 1, 1, 1]} : vector<8x8x8x32xf32> to vector<1x1x8x32xf32>
    %44 = vector.shape_cast %43 : vector<1x1x8x32xf32> to vector<8x32xf32>
    %45 = vector.extract_strided_slice %30 {offsets = [2, 6, 0, 0], sizes = [1, 1, 8, 32], strides = [1, 1, 1, 1]} : vector<8x8x8x32xf32> to vector<1x1x8x32xf32>
    %46 = vector.shape_cast %45 : vector<1x1x8x32xf32> to vector<8x32xf32>
    %47 = vector.extract_strided_slice %30 {offsets = [4, 0, 0, 0], sizes = [1, 1, 8, 32], strides = [1, 1, 1, 1]} : vector<8x8x8x32xf32> to vector<1x1x8x32xf32>
    %48 = vector.shape_cast %47 : vector<1x1x8x32xf32> to vector<8x32xf32>
    %49 = vector.extract_strided_slice %30 {offsets = [4, 2, 0, 0], sizes = [1, 1, 8, 32], strides = [1, 1, 1, 1]} : vector<8x8x8x32xf32> to vector<1x1x8x32xf32>
    %50 = vector.shape_cast %49 : vector<1x1x8x32xf32> to vector<8x32xf32>
    %51 = vector.extract_strided_slice %30 {offsets = [4, 4, 0, 0], sizes = [1, 1, 8, 32], strides = [1, 1, 1, 1]} : vector<8x8x8x32xf32> to vector<1x1x8x32xf32>
    %52 = vector.shape_cast %51 : vector<1x1x8x32xf32> to vector<8x32xf32>
    %53 = vector.extract_strided_slice %30 {offsets = [4, 6, 0, 0], sizes = [1, 1, 8, 32], strides = [1, 1, 1, 1]} : vector<8x8x8x32xf32> to vector<1x1x8x32xf32>
    %54 = vector.shape_cast %53 : vector<1x1x8x32xf32> to vector<8x32xf32>
    %55 = vector.extract_strided_slice %30 {offsets = [6, 0, 0, 0], sizes = [1, 1, 8, 32], strides = [1, 1, 1, 1]} : vector<8x8x8x32xf32> to vector<1x1x8x32xf32>
    %56 = vector.shape_cast %55 : vector<1x1x8x32xf32> to vector<8x32xf32>
    %57 = vector.extract_strided_slice %30 {offsets = [6, 2, 0, 0], sizes = [1, 1, 8, 32], strides = [1, 1, 1, 1]} : vector<8x8x8x32xf32> to vector<1x1x8x32xf32>
    %58 = vector.shape_cast %57 : vector<1x1x8x32xf32> to vector<8x32xf32>
    %59 = vector.extract_strided_slice %30 {offsets = [6, 4, 0, 0], sizes = [1, 1, 8, 32], strides = [1, 1, 1, 1]} : vector<8x8x8x32xf32> to vector<1x1x8x32xf32>
    %60 = vector.shape_cast %59 : vector<1x1x8x32xf32> to vector<8x32xf32>
    %61 = vector.extract_strided_slice %30 {offsets = [6, 6, 0, 0], sizes = [1, 1, 8, 32], strides = [1, 1, 1, 1]} : vector<8x8x8x32xf32> to vector<1x1x8x32xf32>
    %62 = vector.shape_cast %61 : vector<1x1x8x32xf32> to vector<8x32xf32>
    %63 = vector.shape_cast %32 : vector<8x32xf32> to vector<1x8x32xf32>
    %64 = vector.shape_cast %34 : vector<8x32xf32> to vector<1x8x32xf32>
    %65 = vector.shape_cast %36 : vector<8x32xf32> to vector<1x8x32xf32>
    %66 = vector.shape_cast %38 : vector<8x32xf32> to vector<1x8x32xf32>
    %67 = vector.shape_cast %40 : vector<8x32xf32> to vector<1x8x32xf32>
    %68 = vector.shape_cast %42 : vector<8x32xf32> to vector<1x8x32xf32>
    %69 = vector.shape_cast %44 : vector<8x32xf32> to vector<1x8x32xf32>
    %70 = vector.shape_cast %46 : vector<8x32xf32> to vector<1x8x32xf32>
    %71 = vector.shape_cast %48 : vector<8x32xf32> to vector<1x8x32xf32>
    %72 = vector.shape_cast %50 : vector<8x32xf32> to vector<1x8x32xf32>
    %73 = vector.shape_cast %52 : vector<8x32xf32> to vector<1x8x32xf32>
    %74 = vector.shape_cast %54 : vector<8x32xf32> to vector<1x8x32xf32>
    %75 = vector.shape_cast %56 : vector<8x32xf32> to vector<1x8x32xf32>
    %76 = vector.shape_cast %58 : vector<8x32xf32> to vector<1x8x32xf32>
    %77 = vector.shape_cast %60 : vector<8x32xf32> to vector<1x8x32xf32>
    %78 = vector.shape_cast %62 : vector<8x32xf32> to vector<1x8x32xf32>
    %79 = tpu.concatenate %63, %64, %65, %66, %67, %68, %69, %70, %71, %72, %73, %74, %75, %76, %77, %78 in 0 : vector<1x8x32xf32>, vector<1x8x32xf32>, vector<1x8x32xf32>, vector<1x8x32xf32>, vector<1x8x32xf32>, vector<1x8x32xf32>, vector<1x8x32xf32>, vector<1x8x32xf32>, vector<1x8x32xf32>, vector<1x8x32xf32>, vector<1x8x32xf32>, vector<1x8x32xf32>, vector<1x8x32xf32>, vector<1x8x32xf32>, vector<1x8x32xf32>, vector<1x8x32xf32> -> vector<16x8x32xf32>
    %c0_15 = arith.constant 0 : index
    %c0_16 = arith.constant 0 : index
    %c0_17 = arith.constant 0 : index
    %80 = vector.load %arg6[%c0_15, %c0_16, %c0_17] : memref<16x32x64xf32, #tpu.memory_space<vmem>>, vector<16x32x64xf32>
    "tpu.trace_start"() <{level = 10 : i32, message = "pbc,pcf->pbf"}> : () -> ()
    %cst_18 = arith.constant dense<0.000000e+00> : vector<16x8x64xf32>
    %81 = tpu.matmul %79, %80, %cst_18 {dimension_numbers = #tpu.dot_dimension_numbers<[2], [1], [1], [2], [0, 0, 0, 1, 1, 2], [0], [0]>} : vector<16x8x32xf32>, vector<16x32x64xf32>, vector<16x8x64xf32> -> vector<16x8x64xf32>
    "tpu.trace_stop"() : () -> ()
    %cst_19 = arith.constant dense<0.000000e+00> : vector<8x64xf32>
    %82 = vector.multi_reduction <add>, %81, %cst_19 [0] : vector<16x8x64xf32> to vector<8x64xf32>
    %c0_20 = arith.constant 0 : index
    %c0_21 = arith.constant 0 : index
    %83 = vector.load %arg7[%c0_20, %c0_21] : memref<1x64xf32, #tpu.memory_space<vmem>>, vector<1x64xf32>
    %84 = vector.broadcast %83 : vector<1x64xf32> to vector<8x64xf32>
    %85 = arith.addf %82, %84 : vector<8x64xf32>
    %cst_22 = arith.constant 0.000000e+00 : f32
    %86 = vector.broadcast %cst_22 : f32 to vector<8x64xf32>
    %87 = arith.maximumf %85, %86 : vector<8x64xf32>
    %c0_23 = arith.constant 0 : index
    %c0_24 = arith.constant 0 : index
    %88 = vector.load %arg8[%c0_23, %c0_24] : memref<64x8xf32, #tpu.memory_space<vmem>>, vector<64x8xf32>
    %cst_25 = arith.constant dense<0.000000e+00> : vector<8x8xf32>
    %89 = tpu.matmul %87, %88, %cst_25 {dimension_numbers = #tpu.dot_dimension_numbers<[1], [0], [0], [1], [0, 0, 1, 1], [], []>} : vector<8x64xf32>, vector<64x8xf32>, vector<8x8xf32> -> vector<8x8xf32>
    %c0_26 = arith.constant 0 : index
    %c0_27 = arith.constant 0 : index
    %90 = vector.load %arg9[%c0_26, %c0_27] : memref<1x8xf32, #tpu.memory_space<vmem>>, vector<1x8xf32>
    %91 = vector.broadcast %90 : vector<1x8xf32> to vector<8x8xf32>
    %92 = arith.addf %89, %91 : vector<8x8xf32>
    %c0_28 = arith.constant 0 : index
    %c0_29 = arith.constant 0 : index
    %93 = vector.load %arg10[%c0_28, %c0_29] : memref<8x8xf32, #tpu.memory_space<vmem>>, vector<8x8xf32>
    tpu.vector_store %arg10[%c0_28, %c0_29], %92 {strides = array<i32>} : memref<8x8xf32, #tpu.memory_space<vmem>>, vector<8x8xf32>,
    return
  }
  func.func @transform_0(%arg0: i32) -> (i32, i32, i32) {
    %c0_i32 = arith.constant 0 : i32
    %c0_i32_0 = arith.constant 0 : i32
    %c0_i32_1 = arith.constant 0 : i32
    return %c0_i32, %arg0, %c0_i32_0 : i32, i32, i32
  }
  func.func @transform_1(%arg0: i32) -> (i32, i32) {
    %c0_i32 = arith.constant 0 : i32
    %c0_i32_0 = arith.constant 0 : i32
    %c0_i32_1 = arith.constant 0 : i32
    return %c0_i32, %c0_i32_0 : i32, i32
  }
  func.func @transform_2(%arg0: i32) -> (i32, i32) {
    %c0_i32 = arith.constant 0 : i32
    %c0_i32_0 = arith.constant 0 : i32
    %c0_i32_1 = arith.constant 0 : i32
    return %c0_i32, %c0_i32_0 : i32, i32
  }
  func.func @transform_3(%arg0: i32) -> (i32, i32) {
    %c0_i32 = arith.constant 0 : i32
    %c0_i32_0 = arith.constant 0 : i32
    %c0_i32_1 = arith.constant 0 : i32
    return %c0_i32, %c0_i32_0 : i32, i32
  }
  func.func @transform_4(%arg0: i32) -> (i32, i32) {
    %c0_i32 = arith.constant 0 : i32
    %c0_i32_0 = arith.constant 0 : i32
    %c0_i32_1 = arith.constant 0 : i32
    return %c0_i32, %c0_i32_0 : i32, i32
  }
  func.func @transform_5(%arg0: i32) -> (i32, i32, i32) {
    %c0_i32 = arith.constant 0 : i32
    %c0_i32_0 = arith.constant 0 : i32
    %c0_i32_1 = arith.constant 0 : i32
    %c0_i32_2 = arith.constant 0 : i32
    return %c0_i32, %c0_i32_0, %c0_i32_1 : i32, i32, i32
  }
  func.func @transform_6(%arg0: i32) -> (i32, i32) {
    %c0_i32 = arith.constant 0 : i32
    %c0_i32_0 = arith.constant 0 : i32
    %c0_i32_1 = arith.constant 0 : i32
    return %c0_i32, %c0_i32_0 : i32, i32
  }
  func.func @transform_7(%arg0: i32) -> (i32, i32) {
    %c0_i32 = arith.constant 0 : i32
    %c0_i32_0 = arith.constant 0 : i32
    %c0_i32_1 = arith.constant 0 : i32
    return %c0_i32, %c0_i32_0 : i32, i32
  }
  func.func @transform_8(%arg0: i32) -> (i32, i32) {
    %c0_i32 = arith.constant 0 : i32
    %c0_i32_0 = arith.constant 0 : i32
    %c0_i32_1 = arith.constant 0 : i32
    return %c0_i32, %c0_i32_0 : i32, i32
  }
  func.func @transform_9(%arg0: i32) -> (i32, i32) {
    %c0_i32 = arith.constant 0 : i32
    %c0_i32_0 = arith.constant 0 : i32
    return %arg0, %c0_i32 : i32, i32
  }
}

</mosaic_0001>

<llo_original>
// kernel: affine_localizer_forward.1
$region0: #{affine_localizer_forward.1}
  #allocation0 [shape = 'u32[]', space=smem, size = 0x4, offset = 0x4, fixed_abs, tag = 'smem constant byte address 0x4 - core index']
  #allocation1 [shape = 'u32[144,128]{1,0:T(1,128)}', space=vmem, size = 0x12000, scoped, tag = 'internal scratch']
  %s0 = inlined_call_operand.vmem [shape: f32[64,8,36], index: 0, kind: input, shape index: {}]
  %s1 = inlined_call_operand.vmem [shape: f32[36,16], index: 1, kind: input, shape index: {}]
  %s2 = inlined_call_operand.vmem [shape: f32[1,16], index: 2, kind: input, shape index: {}]
  %s3 = inlined_call_operand.vmem [shape: f32[16,32], index: 3, kind: input, shape index: {}]
  %s4 = inlined_call_operand.vmem [shape: f32[1,32], index: 4, kind: input, shape index: {}]
  %s5 = inlined_call_operand.vmem [shape: f32[16,32,64], index: 5, kind: input, shape index: {}]
  %s6 = inlined_call_operand.vmem [shape: f32[1,64], index: 6, kind: input, shape index: {}]
  %s7 = inlined_call_operand.vmem [shape: f32[64,8], index: 7, kind: input, shape index: {}]
  %s8 = inlined_call_operand.vmem [shape: f32[1,8], index: 8, kind: input, shape index: {}]
  %s9 = inlined_call_operand.vmem [shape: f32[8,8], index: 9, kind: output, shape index: {}]
  %s10 = sld [smem:[#allocation0]]
  $region46: #{affine_localizer_forward.1} parent=0
    _
  %s12 = ssub.s32 1, %s10
  %s13 = scalar_select 0, %s12, %s10
  // Predicated region
  $region2: #{affine_localizer_forward.1} parent=0 // pred_check
    _
  $region3: #{affine_localizer_forward.1} parent=0 // pred_check_branch
    %15 = sbr.rel (0) target = $region5
  $region4: #{affine_localizer_forward.1} parent=0 // pred_region
    _
  $region5: #{affine_localizer_forward.1} parent=0 // pred_fallthru
    _
  // Predicated region
  $region6: #{affine_localizer_forward.1} parent=0 // pred_check
    _
  $region7: #{affine_localizer_forward.1} parent=0 // pred_check_branch
    %17 = sbr.rel (0) target = $region9
  $region8: #{affine_localizer_forward.1} parent=0 // pred_region
    _
  $region9: #{affine_localizer_forward.1} parent=0 // pred_fallthru
    _
  // Predicated region
  $region10: #{affine_localizer_forward.1} parent=0 // pred_check
    _
  $region11: #{affine_localizer_forward.1} parent=0 // pred_check_branch
    %19 = sbr.rel (0) target = $region13
  $region12: #{affine_localizer_forward.1} parent=0 // pred_region
    _
  $region13: #{affine_localizer_forward.1} parent=0 // pred_fallthru
    _
  // Predicated region
  $region14: #{affine_localizer_forward.1} parent=0 // pred_check
    _
  $region15: #{affine_localizer_forward.1} parent=0 // pred_check_branch
    %21 = sbr.rel (0) target = $region17
  $region16: #{affine_localizer_forward.1} parent=0 // pred_region
    _
  $region17: #{affine_localizer_forward.1} parent=0 // pred_fallthru
    _
  // Predicated region
  $region18: #{affine_localizer_forward.1} parent=0 // pred_check
    _
  $region19: #{affine_localizer_forward.1} parent=0 // pred_check_branch
    %23 = sbr.rel (0) target = $region21
  $region20: #{affine_localizer_forward.1} parent=0 // pred_region
    _
  $region21: #{affine_localizer_forward.1} parent=0 // pred_fallthru
    _
  // Predicated region
  $region22: #{affine_localizer_forward.1} parent=0 // pred_check
    _
  $region23: #{affine_localizer_forward.1} parent=0 // pred_check_branch
    %25 = sbr.rel (0) target = $region25
  $region24: #{affine_localizer_forward.1} parent=0 // pred_region
    _
  $region25: #{affine_localizer_forward.1} parent=0 // pred_fallthru
    _
  // Predicated region
  $region26: #{affine_localizer_forward.1} parent=0 // pred_check
    _
  $region27: #{affine_localizer_forward.1} parent=0 // pred_check_branch
    %27 = sbr.rel (0) target = $region29
  $region28: #{affine_localizer_forward.1} parent=0 // pred_region
    _
  $region29: #{affine_localizer_forward.1} parent=0 // pred_fallthru
    _
  // Predicated region
  $region30: #{affine_localizer_forward.1} parent=0 // pred_check
    _
  $region31: #{affine_localizer_forward.1} parent=0 // pred_check_branch
    %29 = sbr.rel (0) target = $region33
  $region32: #{affine_localizer_forward.1} parent=0 // pred_region
    _
  $region33: #{affine_localizer_forward.1} parent=0 // pred_fallthru
    _
  // Predicated region
  $region34: #{affine_localizer_forward.1} parent=0 // pred_check
    _
  $region35: #{affine_localizer_forward.1} parent=0 // pred_check_branch
    %31 = sbr.rel (0) target = $region37
  $region36: #{affine_localizer_forward.1} parent=0 // pred_region
    _
  $region37: #{affine_localizer_forward.1} parent=0 // pred_fallthru
    _
  %v32 = vld [vmem:[%s0] sm:$0xff]
  %v33 = vld [vmem:[%s0 + $0x8] sm:$0xff]
  %v34 = vld [vmem:[%s0 + $0x10] sm:$0xff]
  %v35 = vld [vmem:[%s0 + $0x18] sm:$0xff]
  %v36 = vld [vmem:[%s0 + $0x20] sm:$0xff]
  %v37 = vld [vmem:[%s0 + $0x28] sm:$0xff]
  %v38 = vld [vmem:[%s0 + $0x30] sm:$0xff]
  %v39 = vld [vmem:[%s0 + $0x38] sm:$0xff]
  %v40 = vld [vmem:[%s0 + $0x40] sm:$0xff]
  %v41 = vld [vmem:[%s0 + $0x48] sm:$0xff]
  %v42 = vld [vmem:[%s0 + $0x50] sm:$0xff]
  %v43 = vld [vmem:[%s0 + $0x58] sm:$0xff]
  %v44 = vld [vmem:[%s0 + $0x60] sm:$0xff]
  %v45 = vld [vmem:[%s0 + $0x68] sm:$0xff]
  %v46 = vld [vmem:[%s0 + $0x70] sm:$0xff]
  %v47 = vld [vmem:[%s0 + $0x78] sm:$0xff]
  %v48 = vld [vmem:[%s0 + $0x80] sm:$0xff]
  %v49 = vld [vmem:[%s0 + $0x88] sm:$0xff]
  %v50 = vld [vmem:[%s0 + $0x90] sm:$0xff]
  %v51 = vld [vmem:[%s0 + $0x98] sm:$0xff]
  %v52 = vld [vmem:[%s0 + $0xa0] sm:$0xff]
  %v53 = vld [vmem:[%s0 + $0xa8] sm:$0xff]
  %v54 = vld [vmem:[%s0 + $0xb0] sm:$0xff]
  %v55 = vld [vmem:[%s0 + $0xb8] sm:$0xff]
  %v56 = vld [vmem:[%s0 + $0xc0] sm:$0xff]
  %v57 = vld [vmem:[%s0 + $0xc8] sm:$0xff]
  %v58 = vld [vmem:[%s0 + $0xd0] sm:$0xff]
  %v59 = vld [vmem:[%s0 + $0xd8] sm:$0xff]
  %v60 = vld [vmem:[%s0 + $0xe0] sm:$0xff]
  %v61 = vld [vmem:[%s0 + $0xe8] sm:$0xff]
  %v62 = vld [vmem:[%s0 + $0xf0] sm:$0xff]
  %v63 = vld [vmem:[%s0 + $0xf8] sm:$0xff]
  %v64 = vld [vmem:[%s0 + $0x100] sm:$0xff]
  %v65 = vld [vmem:[%s0 + $0x108] sm:$0xff]
  %v66 = vld [vmem:[%s0 + $0x110] sm:$0xff]
  %v67 = vld [vmem:[%s0 + $0x118] sm:$0xff]
  %v68 = vld [vmem:[%s0 + $0x120] sm:$0xff]
  %v69 = vld [vmem:[%s0 + $0x128] sm:$0xff]
  %v70 = vld [vmem:[%s0 + $0x130] sm:$0xff]
  %v71 = vld [vmem:[%s0 + $0x138] sm:$0xff]
  %v72 = vld [vmem:[%s0 + $0x140] sm:$0xff]
  %v73 = vld [vmem:[%s0 + $0x148] sm:$0xff]
  %v74 = vld [vmem:[%s0 + $0x150] sm:$0xff]
  %v75 = vld [vmem:[%s0 + $0x158] sm:$0xff]
  %v76 = vld [vmem:[%s0 + $0x160] sm:$0xff]
  %v77 = vld [vmem:[%s0 + $0x168] sm:$0xff]
  %v78 = vld [vmem:[%s0 + $0x170] sm:$0xff]
  %v79 = vld [vmem:[%s0 + $0x178] sm:$0xff]
  %v80 = vld [vmem:[%s0 + $0x180] sm:$0xff]
  %v81 = vld [vmem:[%s0 + $0x188] sm:$0xff]
  %v82 = vld [vmem:[%s0 + $0x190] sm:$0xff]
  %v83 = vld [vmem:[%s0 + $0x198] sm:$0xff]
  %v84 = vld [vmem:[%s0 + $0x1a0] sm:$0xff]
  %v85 = vld [vmem:[%s0 + $0x1a8] sm:$0xff]
  %v86 = vld [vmem:[%s0 + $0x1b0] sm:$0xff]
  %v87 = vld [vmem:[%s0 + $0x1b8] sm:$0xff]
  %v88 = vld [vmem:[%s0 + $0x1c0] sm:$0xff]
  %v89 = vld [vmem:[%s0 + $0x1c8] sm:$0xff]
  %v90 = vld [vmem:[%s0 + $0x1d0] sm:$0xff]
  %v91 = vld [vmem:[%s0 + $0x1d8] sm:$0xff]
  %v92 = vld [vmem:[%s0 + $0x1e0] sm:$0xff]
  %v93 = vld [vmem:[%s0 + $0x1e8] sm:$0xff]
  %v94 = vld [vmem:[%s0 + $0x1f0] sm:$0xff]
  %v95 = vld [vmem:[%s0 + $0x1f8] sm:$0xff]
  %v96 = vld [vmem:[%s1] sm:$0xff]
  %v97 = vld [vmem:[%s1 + $0x8] sm:$0xff]
  %v98 = vld [vmem:[%s1 + $0x10] sm:$0xff]
  %v99 = vld [vmem:[%s1 + $0x18] sm:$0xff]
  %v100 = vld [vmem:[%s1 + $0x20] sm:$0xf]
  %v101 = vld [vmem:[%s2] sm:$0x1]
  %v103 = vlaneseq
  %v104 = vshrl.u32 %v103, 7
  %v105 = vsub.s32 0, %v104
  %v106 = vrot.slane %v101, %v105
  %vm108 = vcmask 293888
  %v110 = vsel %vm108, %v32, 0
  %v113 = vsel %vm108, %v33, 0
  %v116 = vsel %vm108, %v34, 0
  %v119 = vsel %vm108, %v35, 0
  %v122 = vsel %vm108, %v36, 0
  %v125 = vsel %vm108, %v37, 0
  %v128 = vsel %vm108, %v38, 0
  %v131 = vsel %vm108, %v39, 0
  %v134 = vsel %vm108, %v40, 0
  %v137 = vsel %vm108, %v41, 0
  %v140 = vsel %vm108, %v42, 0
  %v143 = vsel %vm108, %v43, 0
  %v146 = vsel %vm108, %v44, 0
  %v149 = vsel %vm108, %v45, 0
  %v152 = vsel %vm108, %v46, 0
  %v155 = vsel %vm108, %v47, 0
  %v158 = vsel %vm108, %v48, 0
  %v161 = vsel %vm108, %v49, 0
  %v164 = vsel %vm108, %v50, 0
  %v167 = vsel %vm108, %v51, 0
  %v170 = vsel %vm108, %v52, 0
  %v173 = vsel %vm108, %v53, 0
  %v176 = vsel %vm108, %v54, 0
  %v179 = vsel %vm108, %v55, 0
  %v182 = vsel %vm108, %v56, 0
  %v185 = vsel %vm108, %v57, 0
  %v188 = vsel %vm108, %v58, 0
  %v191 = vsel %vm108, %v59, 0
  %v194 = vsel %vm108, %v60, 0
  %v197 = vsel %vm108, %v61, 0
  %v200 = vsel %vm108, %v62, 0
  %v203 = vsel %vm108, %v63, 0
  %v206 = vsel %vm108, %v64, 0
  %v209 = vsel %vm108, %v65, 0
  %v212 = vsel %vm108, %v66, 0
  %v215 = vsel %vm108, %v67, 0
  %v218 = vsel %vm108, %v68, 0
  %v221 = vsel %vm108, %v69, 0
  %v224 = vsel %vm108, %v70, 0
  %v227 = vsel %vm108, %v71, 0
  %v230 = vsel %vm108, %v72, 0
  %v233 = vsel %vm108, %v73, 0
  %v236 = vsel %vm108, %v74, 0
  %v239 = vsel %vm108, %v75, 0
  %v242 = vsel %vm108, %v76, 0
  %v245 = vsel %vm108, %v77, 0
  %v248 = vsel %vm108, %v78, 0
  %v251 = vsel %vm108, %v79, 0
  %v254 = vsel %vm108, %v80, 0
  %v257 = vsel %vm108, %v81, 0
  %v260 = vsel %vm108, %v82, 0
  %v263 = vsel %vm108, %v83, 0
  %v266 = vsel %vm108, %v84, 0
  %v269 = vsel %vm108, %v85, 0
  %v272 = vsel %vm108, %v86, 0
  %v275 = vsel %vm108, %v87, 0
  %v278 = vsel %vm108, %v88, 0
  %v281 = vsel %vm108, %v89, 0
  %v284 = vsel %vm108, %v90, 0
  %v287 = vsel %vm108, %v91, 0
  %v290 = vsel %vm108, %v92, 0
  %v293 = vsel %vm108, %v93, 0
  %v296 = vsel %vm108, %v94, 0
  %v299 = vsel %vm108, %v95, 0
  %vm301 = vcmask 1043456
  %v303 = vsel %vm301, %v100, 0
  %305 = vmatprep.subr.mxu0 0.0
  %306 = vmatpush1.msra.mxu0 0.0
  %307 = vmatprep.subr.mxu0 0.0
  %308 = vmatpush1.msra.mxu0 0.0
  %309 = vmatprep.subr.mxu0 0.0
  %310 = vmatpush1.msra.mxu0 0.0
  %311 = vmatprep.subr.mxu0 0.0
  %312 = vmatpush1.msra.mxu0 0.0
  %313 = vmatprep.subr.mxu0 0.0
  %314 = vmatpush1.msra.mxu0 0.0
  %315 = vmatprep.subr.mxu0 0.0
  %316 = vmatpush1.msra.mxu0 0.0
  %317 = vmatprep.subr.mxu0 0.0
  %318 = vmatpush1.msra.mxu0 0.0
  %319 = vmatprep.subr.mxu0 0.0
  %320 = vmatpush1.msra.mxu0 0.0
  %321 = vmatprep.subr.mxu0 0.0
  %322 = vmatpush1.msra.mxu0 0.0
  %323 = vmatprep.subr.mxu0 0.0
  %324 = vmatpush1.msra.mxu0 0.0
  %325 = vmatprep.subr.mxu0 0.0
  %326 = vmatpush1.msra.mxu0 0.0
  %327 = vmatprep.subr.mxu0 0.0
  %328 = vmatpush1.msra.mxu0 %v303
  %329 = vmatprep.subr.mxu0 0.0
  %330 = vmatpush1.msra.mxu0 %v99
  %331 = vmatprep.subr.mxu0 0.0
  %332 = vmatpush1.msra.mxu0 %v98
  %333 = vmatprep.subr.mxu0 0.0
  %334 = vmatpush1.msra.mxu0 %v97
  %335 = vmatprep.subr.mxu0 0.0
  %336 = vmatpush1.msra.mxu0 %v96
  %337 = vmatprep.subr.mxu0 0.0
  %338 = vmatpush2.msra.mxu0 0.0
  %339 = vmatprep.subr.mxu0 0.0
  %340 = vmatpush2.msra.mxu0 0.0
  %341 = vmatprep.subr.mxu0 0.0
  %342 = vmatpush2.msra.mxu0 0.0
  %343 = vmatprep.subr.mxu0 0.0
  %344 = vmatpush2.msra.mxu0 0.0
  %345 = vmatprep.subr.mxu0 0.0
  %346 = vmatpush2.msra.mxu0 0.0
  %347 = vmatprep.subr.mxu0 0.0
  %348 = vmatpush2.msra.mxu0 0.0
  %349 = vmatprep.subr.mxu0 0.0
  %350 = vmatpush2.msra.mxu0 0.0
  %351 = vmatprep.subr.mxu0 0.0
  %352 = vmatpush2.msra.mxu0 0.0
  %353 = vmatprep.subr.mxu0 0.0
  %354 = vmatpush2.msra.mxu0 0.0
  %355 = vmatprep.subr.mxu0 0.0
  %356 = vmatpush2.msra.mxu0 0.0
  %357 = vmatprep.subr.mxu0 0.0
  %358 = vmatpush2.msra.mxu0 0.0
  %359 = vmatprep.subr.mxu0 0.0
  %360 = vmatpush2.msra.mxu0 0.0
  %361 = vmatprep.subr.mxu0 0.0
  %362 = vmatpush2.msra.mxu0 0.0
  %363 = vmatprep.subr.mxu0 0.0
  %364 = vmatpush2.msra.mxu0 0.0
  %365 = vmatprep.subr.mxu0 0.0
  %366 = vmatpush2.msra.mxu0 0.0
  %367 = vmatprep.subr.mxu0 0.0
  %368 = vmatpush2.msra.mxu0 0.0
  %369 = vmatprep.mubr.f32.mxu0 0.0
  %370 = vmatmul.mubr.f32.gmra.mxu0 %v110
  %v371 = vpop.f32.mrf.mxu0
  %v372 = vadd.f32 %v106, %v371
  %v373 = vpop.f32.mrf.mxu0
  %374 = vmatprep.mubr.f32.mxu0 0.0
  %375 = vmatmul.mubr.f32.gmra.mxu0 %v113
  %v376 = vpop.f32.mrf.mxu0
  %v377 = vadd.f32 %v106, %v376
  %v378 = vpop.f32.mrf.mxu0
  %379 = vmatprep.mubr.f32.mxu0 0.0
  %380 = vmatmul.mubr.f32.gmra.mxu0 %v116
  %v381 = vpop.f32.mrf.mxu0
  %v382 = vadd.f32 %v106, %v381
  %v383 = vpop.f32.mrf.mxu0
  %384 = vmatprep.mubr.f32.mxu0 0.0
  %385 = vmatmul.mubr.f32.gmra.mxu0 %v119
  %v386 = vpop.f32.mrf.mxu0
  %v387 = vadd.f32 %v106, %v386
  %v388 = vpop.f32.mrf.mxu0
  %389 = vmatprep.mubr.f32.mxu0 0.0
  %390 = vmatmul.mubr.f32.gmra.mxu0 %v122
  %v391 = vpop.f32.mrf.mxu0
  %v392 = vadd.f32 %v106, %v391
  %v393 = vpop.f32.mrf.mxu0
  %394 = vmatprep.mubr.f32.mxu0 0.0
  %395 = vmatmul.mubr.f32.gmra.mxu0 %v125
  %v396 = vpop.f32.mrf.mxu0
  %v397 = vadd.f32 %v106, %v396
  %v398 = vpop.f32.mrf.mxu0
  %399 = vmatprep.mubr.f32.mxu0 0.0
  %400 = vmatmul.mubr.f32.gmra.mxu0 %v128
  %v401 = vpop.f32.mrf.mxu0
  %v402 = vadd.f32 %v106, %v401
  %v403 = vpop.f32.mrf.mxu0
  %404 = vmatprep.mubr.f32.mxu0 0.0
  %405 = vmatmul.mubr.f32.gmra.mxu0 %v131
  %v406 = vpop.f32.mrf.mxu0
  %v407 = vadd.f32 %v106, %v406
  %v408 = vpop.f32.mrf.mxu0
  %409 = vmatprep.mubr.f32.mxu0 0.0
  %410 = vmatmul.mubr.f32.gmra.mxu0 %v134
  %v411 = vpop.f32.mrf.mxu0
  %v412 = vadd.f32 %v106, %v411
  %v413 = vpop.f32.mrf.mxu0
  %414 = vmatprep.mubr.f32.mxu0 0.0
  %415 = vmatmul.mubr.f32.gmra.mxu0 %v137
  %v416 = vpop.f32.mrf.mxu0
  %v417 = vadd.f32 %v106, %v416
  %v418 = vpop.f32.mrf.mxu0
  %419 = vmatprep.mubr.f32.mxu0 0.0
  %420 = vmatmul.mubr.f32.gmra.mxu0 %v140
  %v421 = vpop.f32.mrf.mxu0
  %v422 = vadd.f32 %v106, %v421
  %v423 = vpop.f32.mrf.mxu0
  %424 = vmatprep.mubr.f32.mxu0 0.0
  %425 = vmatmul.mubr.f32.gmra.mxu0 %v143
  %v426 = vpop.f32.mrf.mxu0
  %v427 = vadd.f32 %v106, %v426
  %v428 = vpop.f32.mrf.mxu0
  %429 = vmatprep.mubr.f32.mxu0 0.0
  %430 = vmatmul.mubr.f32.gmra.mxu0 %v146
  %v431 = vpop.f32.mrf.mxu0
  %v432 = vadd.f32 %v106, %v431
  %v433 = vpop.f32.mrf.mxu0
  %434 = vmatprep.mubr.f32.mxu0 0.0
  %435 = vmatmul.mubr.f32.gmra.mxu0 %v149
  %v436 = vpop.f32.mrf.mxu0
  %v437 = vadd.f32 %v106, %v436
  %v438 = vpop.f32.mrf.mxu0
  %439 = vmatprep.mubr.f32.mxu0 0.0
  %440 = vmatmul.mubr.f32.gmra.mxu0 %v152
  %v441 = vpop.f32.mrf.mxu0
  %v442 = vadd.f32 %v106, %v441
  %v443 = vpop.f32.mrf.mxu0
  %444 = vmatprep.mubr.f32.mxu0 0.0
  %445 = vmatmul.mubr.f32.gmra.mxu0 %v155
  %v446 = vpop.f32.mrf.mxu0
  %v447 = vadd.f32 %v106, %v446
  %v448 = vpop.f32.mrf.mxu0
  %449 = vmatprep.mubr.f32.mxu0 0.0
  %450 = vmatmul.mubr.f32.gmra.mxu0 %v158
  %v451 = vpop.f32.mrf.mxu0
  %v452 = vadd.f32 %v106, %v451
  %v453 = vpop.f32.mrf.mxu0
  %454 = vmatprep.mubr.f32.mxu0 0.0
  %455 = vmatmul.mubr.f32.gmra.mxu0 %v161
  %v456 = vpop.f32.mrf.mxu0
  %v457 = vadd.f32 %v106, %v456
  %v458 = vpop.f32.mrf.mxu0
  %459 = vmatprep.mubr.f32.mxu0 0.0
  %460 = vmatmul.mubr.f32.gmra.mxu0 %v164
  %v461 = vpop.f32.mrf.mxu0
  %v462 = vadd.f32 %v106, %v461
  %v463 = vpop.f32.mrf.mxu0
  %464 = vmatprep.mubr.f32.mxu0 0.0
  %465 = vmatmul.mubr.f32.gmra.mxu0 %v167
  %v466 = vpop.f32.mrf.mxu0
  %v467 = vadd.f32 %v106, %v466
  %v468 = vpop.f32.mrf.mxu0
  %469 = vmatprep.mubr.f32.mxu0 0.0
  %470 = vmatmul.mubr.f32.gmra.mxu0 %v170
  %v471 = vpop.f32.mrf.mxu0
  %v472 = vadd.f32 %v106, %v471
  %v473 = vpop.f32.mrf.mxu0
  %474 = vmatprep.mubr.f32.mxu0 0.0
  %475 = vmatmul.mubr.f32.gmra.mxu0 %v173
  %v476 = vpop.f32.mrf.mxu0
  %v477 = vadd.f32 %v106, %v476
  %v478 = vpop.f32.mrf.mxu0
  %479 = vmatprep.mubr.f32.mxu0 0.0
  %480 = vmatmul.mubr.f32.gmra.mxu0 %v176
  %v481 = vpop.f32.mrf.mxu0
  %v482 = vadd.f32 %v106, %v481
  %v483 = vpop.f32.mrf.mxu0
  %484 = vmatprep.mubr.f32.mxu0 0.0
  %485 = vmatmul.mubr.f32.gmra.mxu0 %v179
  %v486 = vpop.f32.mrf.mxu0
  %v487 = vadd.f32 %v106, %v486
  %v488 = vpop.f32.mrf.mxu0
  %489 = vmatprep.mubr.f32.mxu0 0.0
  %490 = vmatmul.mubr.f32.gmra.mxu0 %v182
  %v491 = vpop.f32.mrf.mxu0
  %v492 = vadd.f32 %v106, %v491
  %v493 = vpop.f32.mrf.mxu0
  %494 = vmatprep.mubr.f32.mxu0 0.0
  %495 = vmatmul.mubr.f32.gmra.mxu0 %v185
  %v496 = vpop.f32.mrf.mxu0
  %v497 = vadd.f32 %v106, %v496
  %v498 = vpop.f32.mrf.mxu0
  %499 = vmatprep.mubr.f32.mxu0 0.0
  %500 = vmatmul.mubr.f32.gmra.mxu0 %v188
  %v501 = vpop.f32.mrf.mxu0
  %v502 = vadd.f32 %v106, %v501
  %v503 = vpop.f32.mrf.mxu0
  %504 = vmatprep.mubr.f32.mxu0 0.0
  %505 = vmatmul.mubr.f32.gmra.mxu0 %v191
  %v506 = vpop.f32.mrf.mxu0
  %v507 = vadd.f32 %v106, %v506
  %v508 = vpop.f32.mrf.mxu0
  %509 = vmatprep.mubr.f32.mxu0 0.0
  %510 = vmatmul.mubr.f32.gmra.mxu0 %v194
  %v511 = vpop.f32.mrf.mxu0
  %v512 = vadd.f32 %v106, %v511
  %v513 = vpop.f32.mrf.mxu0
  %514 = vmatprep.mubr.f32.mxu0 0.0
  %515 = vmatmul.mubr.f32.gmra.mxu0 %v197
  %v516 = vpop.f32.mrf.mxu0
  %v517 = vadd.f32 %v106, %v516
  %v518 = vpop.f32.mrf.mxu0
  %519 = vmatprep.mubr.f32.mxu0 0.0
  %520 = vmatmul.mubr.f32.gmra.mxu0 %v200
  %v521 = vpop.f32.mrf.mxu0
  %v522 = vadd.f32 %v106, %v521
  %v523 = vpop.f32.mrf.mxu0
  %524 = vmatprep.mubr.f32.mxu0 0.0
  %525 = vmatmul.mubr.f32.gmra.mxu0 %v203
  %v526 = vpop.f32.mrf.mxu0
  %v527 = vadd.f32 %v106, %v526
  %v528 = vpop.f32.mrf.mxu0
  %529 = vmatprep.mubr.f32.mxu0 0.0
  %530 = vmatmul.mubr.f32.gmra.mxu0 %v206
  %v531 = vpop.f32.mrf.mxu0
  %v532 = vadd.f32 %v106, %v531
  %v533 = vpop.f32.mrf.mxu0
  %534 = vmatprep.mubr.f32.mxu0 0.0
  %535 = vmatmul.mubr.f32.gmra.mxu0 %v209
  %v536 = vpop.f32.mrf.mxu0
  %v537 = vadd.f32 %v106, %v536
  %v538 = vpop.f32.mrf.mxu0
  %539 = vmatprep.mubr.f32.mxu0 0.0
  %540 = vmatmul.mubr.f32.gmra.mxu0 %v212
  %v541 = vpop.f32.mrf.mxu0
  %v542 = vadd.f32 %v106, %v541
  %v543 = vpop.f32.mrf.mxu0
  %544 = vmatprep.mubr.f32.mxu0 0.0
  %545 = vmatmul.mubr.f32.gmra.mxu0 %v215
  %v546 = vpop.f32.mrf.mxu0
  %v547 = vadd.f32 %v106, %v546
  %v548 = vpop.f32.mrf.mxu0
  %549 = vmatprep.mubr.f32.mxu0 0.0
  %550 = vmatmul.mubr.f32.gmra.mxu0 %v218
  %v551 = vpop.f32.mrf.mxu0
  %v552 = vadd.f32 %v106, %v551
  %v553 = vpop.f32.mrf.mxu0
  %554 = vmatprep.mubr.f32.mxu0 0.0
  %555 = vmatmul.mubr.f32.gmra.mxu0 %v221
  %v556 = vpop.f32.mrf.mxu0
  %v557 = vadd.f32 %v106, %v556
  %v558 = vpop.f32.mrf.mxu0
  %559 = vmatprep.mubr.f32.mxu0 0.0
  %560 = vmatmul.mubr.f32.gmra.mxu0 %v224
  %v561 = vpop.f32.mrf.mxu0
  %v562 = vadd.f32 %v106, %v561
  %v563 = vpop.f32.mrf.mxu0
  %564 = vmatprep.mubr.f32.mxu0 0.0
  %565 = vmatmul.mubr.f32.gmra.mxu0 %v227
  %v566 = vpop.f32.mrf.mxu0
  %v567 = vadd.f32 %v106, %v566
  %v568 = vpop.f32.mrf.mxu0
  %569 = vmatprep.mubr.f32.mxu0 0.0
  %570 = vmatmul.mubr.f32.gmra.mxu0 %v230
  %v571 = vpop.f32.mrf.mxu0
  %v572 = vadd.f32 %v106, %v571
  %v573 = vpop.f32.mrf.mxu0
  %574 = vmatprep.mubr.f32.mxu0 0.0
  %575 = vmatmul.mubr.f32.gmra.mxu0 %v233
  %v576 = vpop.f32.mrf.mxu0
  %v577 = vadd.f32 %v106, %v576
  %v578 = vpop.f32.mrf.mxu0
  %579 = vmatprep.mubr.f32.mxu0 0.0
  %580 = vmatmul.mubr.f32.gmra.mxu0 %v236
  %v581 = vpop.f32.mrf.mxu0
  %v582 = vadd.f32 %v106, %v581
  %v583 = vpop.f32.mrf.mxu0
  %584 = vmatprep.mubr.f32.mxu0 0.0
  %585 = vmatmul.mubr.f32.gmra.mxu0 %v239
  %v586 = vpop.f32.mrf.mxu0
  %v587 = vadd.f32 %v106, %v586
  %v588 = vpop.f32.mrf.mxu0
  %589 = vmatprep.mubr.f32.mxu0 0.0
  %590 = vmatmul.mubr.f32.gmra.mxu0 %v242
  %v591 = vpop.f32.mrf.mxu0
  %v592 = vadd.f32 %v106, %v591
  %v593 = vpop.f32.mrf.mxu0
  %594 = vmatprep.mubr.f32.mxu0 0.0
  %595 = vmatmul.mubr.f32.gmra.mxu0 %v245
  %v596 = vpop.f32.mrf.mxu0
  %v597 = vadd.f32 %v106, %v596
  %v598 = vpop.f32.mrf.mxu0
  %599 = vmatprep.mubr.f32.mxu0 0.0
  %600 = vmatmul.mubr.f32.gmra.mxu0 %v248
  %v601 = vpop.f32.mrf.mxu0
  %v602 = vadd.f32 %v106, %v601
  %v603 = vpop.f32.mrf.mxu0
  %604 = vmatprep.mubr.f32.mxu0 0.0
  %605 = vmatmul.mubr.f32.gmra.mxu0 %v251
  %v606 = vpop.f32.mrf.mxu0
  %v607 = vadd.f32 %v106, %v606
  %v608 = vpop.f32.mrf.mxu0
  %609 = vmatprep.mubr.f32.mxu0 0.0
  %610 = vmatmul.mubr.f32.gmra.mxu0 %v254
  %v611 = vpop.f32.mrf.mxu0
  %v612 = vadd.f32 %v106, %v611
  %v613 = vpop.f32.mrf.mxu0
  %614 = vmatprep.mubr.f32.mxu0 0.0
  %615 = vmatmul.mubr.f32.gmra.mxu0 %v257
  %v616 = vpop.f32.mrf.mxu0
  %v617 = vadd.f32 %v106, %v616
  %v618 = vpop.f32.mrf.mxu0
  %619 = vmatprep.mubr.f32.mxu0 0.0
  %620 = vmatmul.mubr.f32.gmra.mxu0 %v260
  %v621 = vpop.f32.mrf.mxu0
  %v622 = vadd.f32 %v106, %v621
  %v623 = vpop.f32.mrf.mxu0
  %624 = vmatprep.mubr.f32.mxu0 0.0
  %625 = vmatmul.mubr.f32.gmra.mxu0 %v263
  %v626 = vpop.f32.mrf.mxu0
  %v627 = vadd.f32 %v106, %v626
  %v628 = vpop.f32.mrf.mxu0
  %629 = vmatprep.mubr.f32.mxu0 0.0
  %630 = vmatmul.mubr.f32.gmra.mxu0 %v266
  %v631 = vpop.f32.mrf.mxu0
  %v632 = vadd.f32 %v106, %v631
  %v633 = vpop.f32.mrf.mxu0
  %634 = vmatprep.mubr.f32.mxu0 0.0
  %635 = vmatmul.mubr.f32.gmra.mxu0 %v269
  %v636 = vpop.f32.mrf.mxu0
  %v637 = vadd.f32 %v106, %v636
  %v638 = vpop.f32.mrf.mxu0
  %639 = vmatprep.mubr.f32.mxu0 0.0
  %640 = vmatmul.mubr.f32.gmra.mxu0 %v272
  %v641 = vpop.f32.mrf.mxu0
  %v642 = vadd.f32 %v106, %v641
  %v643 = vpop.f32.mrf.mxu0
  %644 = vmatprep.mubr.f32.mxu0 0.0
  %645 = vmatmul.mubr.f32.gmra.mxu0 %v275
  %v646 = vpop.f32.mrf.mxu0
  %v647 = vadd.f32 %v106, %v646
  %v648 = vpop.f32.mrf.mxu0
  %649 = vmatprep.mubr.f32.mxu0 0.0
  %650 = vmatmul.mubr.f32.gmra.mxu0 %v278
  %v651 = vpop.f32.mrf.mxu0
  %v652 = vadd.f32 %v106, %v651
  %v653 = vpop.f32.mrf.mxu0
  %654 = vmatprep.mubr.f32.mxu0 0.0
  %655 = vmatmul.mubr.f32.gmra.mxu0 %v281
  %v656 = vpop.f32.mrf.mxu0
  %v657 = vadd.f32 %v106, %v656
  %v658 = vpop.f32.mrf.mxu0
  %659 = vmatprep.mubr.f32.mxu0 0.0
  %660 = vmatmul.mubr.f32.gmra.mxu0 %v284
  %v661 = vpop.f32.mrf.mxu0
  %v662 = vadd.f32 %v106, %v661
  %v663 = vpop.f32.mrf.mxu0
  %664 = vmatprep.mubr.f32.mxu0 0.0
  %665 = vmatmul.mubr.f32.gmra.mxu0 %v287
  %v666 = vpop.f32.mrf.mxu0
  %v667 = vadd.f32 %v106, %v666
  %v668 = vpop.f32.mrf.mxu0
  %669 = vmatprep.mubr.f32.mxu0 0.0
  %670 = vmatmul.mubr.f32.gmra.mxu0 %v290
  %v671 = vpop.f32.mrf.mxu0
  %v672 = vadd.f32 %v106, %v671
  %v673 = vpop.f32.mrf.mxu0
  %674 = vmatprep.mubr.f32.mxu0 0.0
  %675 = vmatmul.mubr.f32.gmra.mxu0 %v293
  %v676 = vpop.f32.mrf.mxu0
  %v677 = vadd.f32 %v106, %v676
  %v678 = vpop.f32.mrf.mxu0
  %679 = vmatprep.mubr.f32.mxu0 0.0
  %680 = vmatmul.mubr.f32.gmra.mxu0 %v296
  %v681 = vpop.f32.mrf.mxu0
  %v682 = vadd.f32 %v106, %v681
  %v683 = vpop.f32.mrf.mxu0
  %684 = vmatprep.mubr.f32.mxu0 0.0
  %685 = vmatmul.mubr.f32.gmra.mxu0 %v299
  %v686 = vpop.f32.mrf.mxu0
  %v687 = vadd.f32 %v106, %v686
  %v688 = vpop.f32.mrf.mxu0
  %689 = vdwg.mxu0
  %v690 = vmax.f32 %v372, 0.0
  %v691 = vmax.f32 %v377, 0.0
  %v692 = vmax.f32 %v382, 0.0
  %v693 = vmax.f32 %v387, 0.0
  %v694 = vmax.f32 %v392, 0.0
  %v695 = vmax.f32 %v397, 0.0
  %v696 = vmax.f32 %v402, 0.0
  %v697 = vmax.f32 %v407, 0.0
  %v698 = vmax.f32 %v412, 0.0
  %v699 = vmax.f32 %v417, 0.0
  %v700 = vmax.f32 %v422, 0.0
  %v701 = vmax.f32 %v427, 0.0
  %v702 = vmax.f32 %v432, 0.0
  %v703 = vmax.f32 %v437, 0.0
  %v704 = vmax.f32 %v442, 0.0
  %v705 = vmax.f32 %v447, 0.0
  %v706 = vmax.f32 %v452, 0.0
  %v707 = vmax.f32 %v457, 0.0
  %v708 = vmax.f32 %v462, 0.0
  %v709 = vmax.f32 %v467, 0.0
  %v710 = vmax.f32 %v472, 0.0
  %v711 = vmax.f32 %v477, 0.0
  %v712 = vmax.f32 %v482, 0.0
  %v713 = vmax.f32 %v487, 0.0
  %v714 = vmax.f32 %v492, 0.0
  %v715 = vmax.f32 %v497, 0.0
  %v716 = vmax.f32 %v502, 0.0
  %v717 = vmax.f32 %v507, 0.0
  %v718 = vmax.f32 %v512, 0.0
  %v719 = vmax.f32 %v517, 0.0
  %v720 = vmax.f32 %v522, 0.0
  %v721 = vmax.f32 %v527, 0.0
  %v722 = vmax.f32 %v532, 0.0
  %v723 = vmax.f32 %v537, 0.0
  %v724 = vmax.f32 %v542, 0.0
  %v725 = vmax.f32 %v547, 0.0
  %v726 = vmax.f32 %v552, 0.0
  %v727 = vmax.f32 %v557, 0.0
  %v728 = vmax.f32 %v562, 0.0
  %v729 = vmax.f32 %v567, 0.0
  %v730 = vmax.f32 %v572, 0.0
  %v731 = vmax.f32 %v577, 0.0
  %v732 = vmax.f32 %v582, 0.0
  %v733 = vmax.f32 %v587, 0.0
  %v734 = vmax.f32 %v592, 0.0
  %v735 = vmax.f32 %v597, 0.0
  %v736 = vmax.f32 %v602, 0.0
  %v737 = vmax.f32 %v607, 0.0
  %v738 = vmax.f32 %v612, 0.0
  %v739 = vmax.f32 %v617, 0.0
  %v740 = vmax.f32 %v622, 0.0
  %v741 = vmax.f32 %v627, 0.0
  %v742 = vmax.f32 %v632, 0.0
  %v743 = vmax.f32 %v637, 0.0
  %v744 = vmax.f32 %v642, 0.0
  %v745 = vmax.f32 %v647, 0.0
  %v746 = vmax.f32 %v652, 0.0
  %v747 = vmax.f32 %v657, 0.0
  %v748 = vmax.f32 %v662, 0.0
  %v749 = vmax.f32 %v667, 0.0
  %v750 = vmax.f32 %v672, 0.0
  %v751 = vmax.f32 %v677, 0.0
  %v752 = vmax.f32 %v682, 0.0
  %v753 = vmax.f32 %v687, 0.0
  %v754 = vld [vmem:[%s3] sm:$0xff]
  %v755 = vld [vmem:[%s3 + $0x8] sm:$0xff]
  %v756 = vld [vmem:[%s4] sm:$0x1]
  %v758 = vlaneseq
  %v759 = vshrl.u32 %v758, 7
  %v760 = vsub.s32 0, %v759
  %v761 = vrot.slane %v756, %v760
  %vm763 = vcmask 130048
  %v765 = vsel %vm763, %v690, 0
  %v768 = vsel %vm763, %v691, 0
  %v771 = vsel %vm763, %v692, 0
  %v774 = vsel %vm763, %v693, 0
  %v777 = vsel %vm763, %v694, 0
  %v780 = vsel %vm763, %v695, 0
  %v783 = vsel %vm763, %v696, 0
  %v786 = vsel %vm763, %v697, 0
  %v789 = vsel %vm763, %v698, 0
  %v792 = vsel %vm763, %v699, 0
  %v795 = vsel %vm763, %v700, 0
  %v798 = vsel %vm763, %v701, 0
  %v801 = vsel %vm763, %v702, 0
  %v804 = vsel %vm763, %v703, 0
  %v807 = vsel %vm763, %v704, 0
  %v810 = vsel %vm763, %v705, 0
  %v813 = vsel %vm763, %v706, 0
  %v816 = vsel %vm763, %v707, 0
  %v819 = vsel %vm763, %v708, 0
  %v822 = vsel %vm763, %v709, 0
  %v825 = vsel %vm763, %v710, 0
  %v828 = vsel %vm763, %v711, 0
  %v831 = vsel %vm763, %v712, 0
  %v834 = vsel %vm763, %v713, 0
  %v837 = vsel %vm763, %v714, 0
  %v840 = vsel %vm763, %v715, 0
  %v843 = vsel %vm763, %v716, 0
  %v846 = vsel %vm763, %v717, 0
  %v849 = vsel %vm763, %v718, 0
  %v852 = vsel %vm763, %v719, 0
  %v855 = vsel %vm763, %v720, 0
  %v858 = vsel %vm763, %v721, 0
  %v861 = vsel %vm763, %v722, 0
  %v864 = vsel %vm763, %v723, 0
  %v867 = vsel %vm763, %v724, 0
  %v870 = vsel %vm763, %v725, 0
  %v873 = vsel %vm763, %v726, 0
  %v876 = vsel %vm763, %v727, 0
  %v879 = vsel %vm763, %v728, 0
  %v882 = vsel %vm763, %v729, 0
  %v885 = vsel %vm763, %v730, 0
  %v888 = vsel %vm763, %v731, 0
  %v891 = vsel %vm763, %v732, 0
  %v894 = vsel %vm763, %v733, 0
  %v897 = vsel %vm763, %v734, 0
  %v900 = vsel %vm763, %v735, 0
  %v903 = vsel %vm763, %v736, 0
  %v906 = vsel %vm763, %v737, 0
  %v909 = vsel %vm763, %v738, 0
  %v912 = vsel %vm763, %v739, 0
  %v915 = vsel %vm763, %v740, 0
  %v918 = vsel %vm763, %v741, 0
  %v921 = vsel %vm763, %v742, 0
  %v924 = vsel %vm763, %v743, 0
  %v927 = vsel %vm763, %v744, 0
  %v930 = vsel %vm763, %v745, 0
  %v933 = vsel %vm763, %v746, 0
  %v936 = vsel %vm763, %v747, 0
  %v939 = vsel %vm763, %v748, 0
  %v942 = vsel %vm763, %v749, 0
  %v945 = vsel %vm763, %v750, 0
  %v948 = vsel %vm763, %v751, 0
  %v951 = vsel %vm763, %v752, 0
  %v954 = vsel %vm763, %v753, 0
  %956 = vmatprep.subr.mxu0 0.0
  %957 = vmatpush1.msra.mxu0 0.0
  %958 = vmatprep.subr.mxu0 0.0
  %959 = vmatpush1.msra.mxu0 0.0
  %960 = vmatprep.subr.mxu0 0.0
  %961 = vmatpush1.msra.mxu0 0.0
  %962 = vmatprep.subr.mxu0 0.0
  %963 = vmatpush1.msra.mxu0 0.0
  %964 = vmatprep.subr.mxu0 0.0
  %965 = vmatpush1.msra.mxu0 0.0
  %966 = vmatprep.subr.mxu0 0.0
  %967 = vmatpush1.msra.mxu0 0.0
  %968 = vmatprep.subr.mxu0 0.0
  %969 = vmatpush1.msra.mxu0 0.0
  %970 = vmatprep.subr.mxu0 0.0
  %971 = vmatpush1.msra.mxu0 0.0
  %972 = vmatprep.subr.mxu0 0.0
  %973 = vmatpush1.msra.mxu0 0.0
  %974 = vmatprep.subr.mxu0 0.0
  %975 = vmatpush1.msra.mxu0 0.0
  %976 = vmatprep.subr.mxu0 0.0
  %977 = vmatpush1.msra.mxu0 0.0
  %978 = vmatprep.subr.mxu0 0.0
  %979 = vmatpush1.msra.mxu0 0.0
  %980 = vmatprep.subr.mxu0 0.0
  %981 = vmatpush1.msra.mxu0 0.0
  %982 = vmatprep.subr.mxu0 0.0
  %983 = vmatpush1.msra.mxu0 0.0
  %984 = vmatprep.subr.mxu0 0.0
  %985 = vmatpush1.msra.mxu0 %v755
  %986 = vmatprep.subr.mxu0 0.0
  %987 = vmatpush1.msra.mxu0 %v754
  %988 = vmatprep.subr.mxu0 0.0
  %989 = vmatpush2.msra.mxu0 0.0
  %990 = vmatprep.subr.mxu0 0.0
  %991 = vmatpush2.msra.mxu0 0.0
  %992 = vmatprep.subr.mxu0 0.0
  %993 = vmatpush2.msra.mxu0 0.0
  %994 = vmatprep.subr.mxu0 0.0
  %995 = vmatpush2.msra.mxu0 0.0
  %996 = vmatprep.subr.mxu0 0.0
  %997 = vmatpush2.msra.mxu0 0.0
  %998 = vmatprep.subr.mxu0 0.0
  %999 = vmatpush2.msra.mxu0 0.0
  %1000 = vmatprep.subr.mxu0 0.0
  %1001 = vmatpush2.msra.mxu0 0.0
  %1002 = vmatprep.subr.mxu0 0.0
  %1003 = vmatpush2.msra.mxu0 0.0
  %1004 = vmatprep.subr.mxu0 0.0
  %1005 = vmatpush2.msra.mxu0 0.0
  %1006 = vmatprep.subr.mxu0 0.0
  %1007 = vmatpush2.msra.mxu0 0.0
  %1008 = vmatprep.subr.mxu0 0.0
  %1009 = vmatpush2.msra.mxu0 0.0
  %1010 = vmatprep.subr.mxu0 0.0
  %1011 = vmatpush2.msra.mxu0 0.0
  %1012 = vmatprep.subr.mxu0 0.0
  %1013 = vmatpush2.msra.mxu0 0.0
  %1014 = vmatprep.subr.mxu0 0.0
  %1015 = vmatpush2.msra.mxu0 0.0
  %1016 = vmatprep.subr.mxu0 0.0
  %1017 = vmatpush2.msra.mxu0 0.0
  %1018 = vmatprep.subr.mxu0 0.0
  %1019 = vmatpush2.msra.mxu0 0.0
  %1020 = vmatprep.mubr.f32.mxu0 0.0
  %1021 = vmatmul.mubr.f32.gmra.mxu0 %v765
  %v1022 = vpop.f32.mrf.mxu0
  %v1023 = vadd.f32 %v761, %v1022
  %v1024 = vpop.f32.mrf.mxu0
  %1025 = vmatprep.mubr.f32.mxu0 0.0
  %1026 = vmatmul.mubr.f32.gmra.mxu0 %v768
  %v1027 = vpop.f32.mrf.mxu0
  %v1028 = vadd.f32 %v761, %v1027
  %v1029 = vpop.f32.mrf.mxu0
  %1030 = vmatprep.mubr.f32.mxu0 0.0
  %1031 = vmatmul.mubr.f32.gmra.mxu0 %v771
  %v1032 = vpop.f32.mrf.mxu0
  %v1033 = vadd.f32 %v761, %v1032
  %v1034 = vpop.f32.mrf.mxu0
  %1035 = vmatprep.mubr.f32.mxu0 0.0
  %1036 = vmatmul.mubr.f32.gmra.mxu0 %v774
  %v1037 = vpop.f32.mrf.mxu0
  %v1038 = vadd.f32 %v761, %v1037
  %v1039 = vpop.f32.mrf.mxu0
  %1040 = vmatprep.mubr.f32.mxu0 0.0
  %1041 = vmatmul.mubr.f32.gmra.mxu0 %v777
  %v1042 = vpop.f32.mrf.mxu0
  %v1043 = vadd.f32 %v761, %v1042
  %v1044 = vpop.f32.mrf.mxu0
  %1045 = vmatprep.mubr.f32.mxu0 0.0
  %1046 = vmatmul.mubr.f32.gmra.mxu0 %v780
  %v1047 = vpop.f32.mrf.mxu0
  %v1048 = vadd.f32 %v761, %v1047
  %v1049 = vpop.f32.mrf.mxu0
  %1050 = vmatprep.mubr.f32.mxu0 0.0
  %1051 = vmatmul.mubr.f32.gmra.mxu0 %v783
  %v1052 = vpop.f32.mrf.mxu0
  %v1053 = vadd.f32 %v761, %v1052
  %v1054 = vpop.f32.mrf.mxu0
  %1055 = vmatprep.mubr.f32.mxu0 0.0
  %1056 = vmatmul.mubr.f32.gmra.mxu0 %v786
  %v1057 = vpop.f32.mrf.mxu0
  %v1058 = vadd.f32 %v761, %v1057
  %v1059 = vpop.f32.mrf.mxu0
  %1060 = vmatprep.mubr.f32.mxu0 0.0
  %1061 = vmatmul.mubr.f32.gmra.mxu0 %v789
  %v1062 = vpop.f32.mrf.mxu0
  %v1063 = vadd.f32 %v761, %v1062
  %v1064 = vpop.f32.mrf.mxu0
  %1065 = vmatprep.mubr.f32.mxu0 0.0
  %1066 = vmatmul.mubr.f32.gmra.mxu0 %v792
  %v1067 = vpop.f32.mrf.mxu0
  %v1068 = vadd.f32 %v761, %v1067
  %v1069 = vpop.f32.mrf.mxu0
  %1070 = vmatprep.mubr.f32.mxu0 0.0
  %1071 = vmatmul.mubr.f32.gmra.mxu0 %v795
  %v1072 = vpop.f32.mrf.mxu0
  %v1073 = vadd.f32 %v761, %v1072
  %v1074 = vpop.f32.mrf.mxu0
  %1075 = vmatprep.mubr.f32.mxu0 0.0
  %1076 = vmatmul.mubr.f32.gmra.mxu0 %v798
  %v1077 = vpop.f32.mrf.mxu0
  %v1078 = vadd.f32 %v761, %v1077
  %v1079 = vpop.f32.mrf.mxu0
  %1080 = vmatprep.mubr.f32.mxu0 0.0
  %1081 = vmatmul.mubr.f32.gmra.mxu0 %v801
  %v1082 = vpop.f32.mrf.mxu0
  %v1083 = vadd.f32 %v761, %v1082
  %v1084 = vpop.f32.mrf.mxu0
  %1085 = vmatprep.mubr.f32.mxu0 0.0
  %1086 = vmatmul.mubr.f32.gmra.mxu0 %v804
  %v1087 = vpop.f32.mrf.mxu0
  %v1088 = vadd.f32 %v761, %v1087
  %v1089 = vpop.f32.mrf.mxu0
  %1090 = vmatprep.mubr.f32.mxu0 0.0
  %1091 = vmatmul.mubr.f32.gmra.mxu0 %v807
  %v1092 = vpop.f32.mrf.mxu0
  %v1093 = vadd.f32 %v761, %v1092
  %v1094 = vpop.f32.mrf.mxu0
  %1095 = vmatprep.mubr.f32.mxu0 0.0
  %1096 = vmatmul.mubr.f32.gmra.mxu0 %v810
  %v1097 = vpop.f32.mrf.mxu0
  %v1098 = vadd.f32 %v761, %v1097
  %v1099 = vpop.f32.mrf.mxu0
  %1100 = vmatprep.mubr.f32.mxu0 0.0
  %1101 = vmatmul.mubr.f32.gmra.mxu0 %v813
  %v1102 = vpop.f32.mrf.mxu0
  %v1103 = vadd.f32 %v761, %v1102
  %v1104 = vpop.f32.mrf.mxu0
  %1105 = vmatprep.mubr.f32.mxu0 0.0
  %1106 = vmatmul.mubr.f32.gmra.mxu0 %v816
  %v1107 = vpop.f32.mrf.mxu0
  %v1108 = vadd.f32 %v761, %v1107
  %v1109 = vpop.f32.mrf.mxu0
  %1110 = vmatprep.mubr.f32.mxu0 0.0
  %1111 = vmatmul.mubr.f32.gmra.mxu0 %v819
  %v1112 = vpop.f32.mrf.mxu0
  %v1113 = vadd.f32 %v761, %v1112
  %v1114 = vpop.f32.mrf.mxu0
  %1115 = vmatprep.mubr.f32.mxu0 0.0
  %1116 = vmatmul.mubr.f32.gmra.mxu0 %v822
  %v1117 = vpop.f32.mrf.mxu0
  %v1118 = vadd.f32 %v761, %v1117
  %v1119 = vpop.f32.mrf.mxu0
  %1120 = vmatprep.mubr.f32.mxu0 0.0
  %1121 = vmatmul.mubr.f32.gmra.mxu0 %v825
  %v1122 = vpop.f32.mrf.mxu0
  %v1123 = vadd.f32 %v761, %v1122
  %v1124 = vpop.f32.mrf.mxu0
  %1125 = vmatprep.mubr.f32.mxu0 0.0
  %1126 = vmatmul.mubr.f32.gmra.mxu0 %v828
  %v1127 = vpop.f32.mrf.mxu0
  %v1128 = vadd.f32 %v761, %v1127
  %v1129 = vpop.f32.mrf.mxu0
  %1130 = vmatprep.mubr.f32.mxu0 0.0
  %1131 = vmatmul.mubr.f32.gmra.mxu0 %v831
  %v1132 = vpop.f32.mrf.mxu0
  %v1133 = vadd.f32 %v761, %v1132
  %v1134 = vpop.f32.mrf.mxu0
  %1135 = vmatprep.mubr.f32.mxu0 0.0
  %1136 = vmatmul.mubr.f32.gmra.mxu0 %v834
  %v1137 = vpop.f32.mrf.mxu0
  %v1138 = vadd.f32 %v761, %v1137
  %v1139 = vpop.f32.mrf.mxu0
  %1140 = vmatprep.mubr.f32.mxu0 0.0
  %1141 = vmatmul.mubr.f32.gmra.mxu0 %v837
  %v1142 = vpop.f32.mrf.mxu0
  %v1143 = vadd.f32 %v761, %v1142
  %v1144 = vpop.f32.mrf.mxu0
  %1145 = vmatprep.mubr.f32.mxu0 0.0
  %1146 = vmatmul.mubr.f32.gmra.mxu0 %v840
  %v1147 = vpop.f32.mrf.mxu0
  %v1148 = vadd.f32 %v761, %v1147
  %v1149 = vpop.f32.mrf.mxu0
  %1150 = vmatprep.mubr.f32.mxu0 0.0
  %1151 = vmatmul.mubr.f32.gmra.mxu0 %v843
  %v1152 = vpop.f32.mrf.mxu0
  %v1153 = vadd.f32 %v761, %v1152
  %v1154 = vpop.f32.mrf.mxu0
  %1155 = vmatprep.mubr.f32.mxu0 0.0
  %1156 = vmatmul.mubr.f32.gmra.mxu0 %v846
  %v1157 = vpop.f32.mrf.mxu0
  %v1158 = vadd.f32 %v761, %v1157
  %v1159 = vpop.f32.mrf.mxu0
  %1160 = vmatprep.mubr.f32.mxu0 0.0
  %1161 = vmatmul.mubr.f32.gmra.mxu0 %v849
  %v1162 = vpop.f32.mrf.mxu0
  %v1163 = vadd.f32 %v761, %v1162
  %v1164 = vpop.f32.mrf.mxu0
  %1165 = vmatprep.mubr.f32.mxu0 0.0
  %1166 = vmatmul.mubr.f32.gmra.mxu0 %v852
  %v1167 = vpop.f32.mrf.mxu0
  %v1168 = vadd.f32 %v761, %v1167
  %v1169 = vpop.f32.mrf.mxu0
  %1170 = vmatprep.mubr.f32.mxu0 0.0
  %1171 = vmatmul.mubr.f32.gmra.mxu0 %v855
  %v1172 = vpop.f32.mrf.mxu0
  %v1173 = vadd.f32 %v761, %v1172
  %v1174 = vpop.f32.mrf.mxu0
  %1175 = vmatprep.mubr.f32.mxu0 0.0
  %1176 = vmatmul.mubr.f32.gmra.mxu0 %v858
  %v1177 = vpop.f32.mrf.mxu0
  %v1178 = vadd.f32 %v761, %v1177
  %v1179 = vpop.f32.mrf.mxu0
  %1180 = vmatprep.mubr.f32.mxu0 0.0
  %1181 = vmatmul.mubr.f32.gmra.mxu0 %v861
  %v1182 = vpop.f32.mrf.mxu0
  %v1183 = vadd.f32 %v761, %v1182
  %v1184 = vpop.f32.mrf.mxu0
  %1185 = vmatprep.mubr.f32.mxu0 0.0
  %1186 = vmatmul.mubr.f32.gmra.mxu0 %v864
  %v1187 = vpop.f32.mrf.mxu0
  %v1188 = vadd.f32 %v761, %v1187
  %v1189 = vpop.f32.mrf.mxu0
  %1190 = vmatprep.mubr.f32.mxu0 0.0
  %1191 = vmatmul.mubr.f32.gmra.mxu0 %v867
  %v1192 = vpop.f32.mrf.mxu0
  %v1193 = vadd.f32 %v761, %v1192
  %v1194 = vpop.f32.mrf.mxu0
  %1195 = vmatprep.mubr.f32.mxu0 0.0
  %1196 = vmatmul.mubr.f32.gmra.mxu0 %v870
  %v1197 = vpop.f32.mrf.mxu0
  %v1198 = vadd.f32 %v761, %v1197
  %v1199 = vpop.f32.mrf.mxu0
  %1200 = vmatprep.mubr.f32.mxu0 0.0
  %1201 = vmatmul.mubr.f32.gmra.mxu0 %v873
  %v1202 = vpop.f32.mrf.mxu0
  %v1203 = vadd.f32 %v761, %v1202
  %v1204 = vpop.f32.mrf.mxu0
  %1205 = vmatprep.mubr.f32.mxu0 0.0
  %1206 = vmatmul.mubr.f32.gmra.mxu0 %v876
  %v1207 = vpop.f32.mrf.mxu0
  %v1208 = vadd.f32 %v761, %v1207
  %v1209 = vpop.f32.mrf.mxu0
  %1210 = vmatprep.mubr.f32.mxu0 0.0
  %1211 = vmatmul.mubr.f32.gmra.mxu0 %v879
  %v1212 = vpop.f32.mrf.mxu0
  %v1213 = vadd.f32 %v761, %v1212
  %v1214 = vpop.f32.mrf.mxu0
  %1215 = vmatprep.mubr.f32.mxu0 0.0
  %1216 = vmatmul.mubr.f32.gmra.mxu0 %v882
  %v1217 = vpop.f32.mrf.mxu0
  %v1218 = vadd.f32 %v761, %v1217
  %v1219 = vpop.f32.mrf.mxu0
  %1220 = vmatprep.mubr.f32.mxu0 0.0
  %1221 = vmatmul.mubr.f32.gmra.mxu0 %v885
  %v1222 = vpop.f32.mrf.mxu0
  %v1223 = vadd.f32 %v761, %v1222
  %v1224 = vpop.f32.mrf.mxu0
  %1225 = vmatprep.mubr.f32.mxu0 0.0
  %1226 = vmatmul.mubr.f32.gmra.mxu0 %v888
  %v1227 = vpop.f32.mrf.mxu0
  %v1228 = vadd.f32 %v761, %v1227
  %v1229 = vpop.f32.mrf.mxu0
  %1230 = vmatprep.mubr.f32.mxu0 0.0
  %1231 = vmatmul.mubr.f32.gmra.mxu0 %v891
  %v1232 = vpop.f32.mrf.mxu0
  %v1233 = vadd.f32 %v761, %v1232
  %v1234 = vpop.f32.mrf.mxu0
  %1235 = vmatprep.mubr.f32.mxu0 0.0
  %1236 = vmatmul.mubr.f32.gmra.mxu0 %v894
  %v1237 = vpop.f32.mrf.mxu0
  %v1238 = vadd.f32 %v761, %v1237
  %v1239 = vpop.f32.mrf.mxu0
  %1240 = vmatprep.mubr.f32.mxu0 0.0
  %1241 = vmatmul.mubr.f32.gmra.mxu0 %v897
  %v1242 = vpop.f32.mrf.mxu0
  %v1243 = vadd.f32 %v761, %v1242
  %v1244 = vpop.f32.mrf.mxu0
  %1245 = vmatprep.mubr.f32.mxu0 0.0
  %1246 = vmatmul.mubr.f32.gmra.mxu0 %v900
  %v1247 = vpop.f32.mrf.mxu0
  %v1248 = vadd.f32 %v761, %v1247
  %v1249 = vpop.f32.mrf.mxu0
  %1250 = vmatprep.mubr.f32.mxu0 0.0
  %1251 = vmatmul.mubr.f32.gmra.mxu0 %v903
  %v1252 = vpop.f32.mrf.mxu0
  %v1253 = vadd.f32 %v761, %v1252
  %v1254 = vpop.f32.mrf.mxu0
  %1255 = vmatprep.mubr.f32.mxu0 0.0
  %1256 = vmatmul.mubr.f32.gmra.mxu0 %v906
  %v1257 = vpop.f32.mrf.mxu0
  %v1258 = vadd.f32 %v761, %v1257
  %v1259 = vpop.f32.mrf.mxu0
  %1260 = vmatprep.mubr.f32.mxu0 0.0
  %1261 = vmatmul.mubr.f32.gmra.mxu0 %v909
  %v1262 = vpop.f32.mrf.mxu0
  %v1263 = vadd.f32 %v761, %v1262
  %v1264 = vpop.f32.mrf.mxu0
  %1265 = vmatprep.mubr.f32.mxu0 0.0
  %1266 = vmatmul.mubr.f32.gmra.mxu0 %v912
  %v1267 = vpop.f32.mrf.mxu0
  %v1268 = vadd.f32 %v761, %v1267
  %v1269 = vpop.f32.mrf.mxu0
  %1270 = vmatprep.mubr.f32.mxu0 0.0
  %1271 = vmatmul.mubr.f32.gmra.mxu0 %v915
  %v1272 = vpop.f32.mrf.mxu0
  %v1273 = vadd.f32 %v761, %v1272
  %v1274 = vpop.f32.mrf.mxu0
  %1275 = vmatprep.mubr.f32.mxu0 0.0
  %1276 = vmatmul.mubr.f32.gmra.mxu0 %v918
  %v1277 = vpop.f32.mrf.mxu0
  %v1278 = vadd.f32 %v761, %v1277
  %v1279 = vpop.f32.mrf.mxu0
  %1280 = vmatprep.mubr.f32.mxu0 0.0
  %1281 = vmatmul.mubr.f32.gmra.mxu0 %v921
  %v1282 = vpop.f32.mrf.mxu0
  %v1283 = vadd.f32 %v761, %v1282
  %v1284 = vpop.f32.mrf.mxu0
  %1285 = vmatprep.mubr.f32.mxu0 0.0
  %1286 = vmatmul.mubr.f32.gmra.mxu0 %v924
  %v1287 = vpop.f32.mrf.mxu0
  %v1288 = vadd.f32 %v761, %v1287
  %v1289 = vpop.f32.mrf.mxu0
  %1290 = vmatprep.mubr.f32.mxu0 0.0
  %1291 = vmatmul.mubr.f32.gmra.mxu0 %v927
  %v1292 = vpop.f32.mrf.mxu0
  %v1293 = vadd.f32 %v761, %v1292
  %v1294 = vpop.f32.mrf.mxu0
  %1295 = vmatprep.mubr.f32.mxu0 0.0
  %1296 = vmatmul.mubr.f32.gmra.mxu0 %v930
  %v1297 = vpop.f32.mrf.mxu0
  %v1298 = vadd.f32 %v761, %v1297
  %v1299 = vpop.f32.mrf.mxu0
  %1300 = vmatprep.mubr.f32.mxu0 0.0
  %1301 = vmatmul.mubr.f32.gmra.mxu0 %v933
  %v1302 = vpop.f32.mrf.mxu0
  %v1303 = vadd.f32 %v761, %v1302
  %v1304 = vpop.f32.mrf.mxu0
  %1305 = vmatprep.mubr.f32.mxu0 0.0
  %1306 = vmatmul.mubr.f32.gmra.mxu0 %v936
  %v1307 = vpop.f32.mrf.mxu0
  %v1308 = vadd.f32 %v761, %v1307
  %v1309 = vpop.f32.mrf.mxu0
  %1310 = vmatprep.mubr.f32.mxu0 0.0
  %1311 = vmatmul.mubr.f32.gmra.mxu0 %v939
  %v1312 = vpop.f32.mrf.mxu0
  %v1313 = vadd.f32 %v761, %v1312
  %v1314 = vpop.f32.mrf.mxu0
  %1315 = vmatprep.mubr.f32.mxu0 0.0
  %1316 = vmatmul.mubr.f32.gmra.mxu0 %v942
  %v1317 = vpop.f32.mrf.mxu0
  %v1318 = vadd.f32 %v761, %v1317
  %v1319 = vpop.f32.mrf.mxu0
  %1320 = vmatprep.mubr.f32.mxu0 0.0
  %1321 = vmatmul.mubr.f32.gmra.mxu0 %v945
  %v1322 = vpop.f32.mrf.mxu0
  %v1323 = vadd.f32 %v761, %v1322
  %v1324 = vpop.f32.mrf.mxu0
  %1325 = vmatprep.mubr.f32.mxu0 0.0
  %1326 = vmatmul.mubr.f32.gmra.mxu0 %v948
  %v1327 = vpop.f32.mrf.mxu0
  %v1328 = vadd.f32 %v761, %v1327
  %v1329 = vpop.f32.mrf.mxu0
  %1330 = vmatprep.mubr.f32.mxu0 0.0
  %1331 = vmatmul.mubr.f32.gmra.mxu0 %v951
  %v1332 = vpop.f32.mrf.mxu0
  %v1333 = vadd.f32 %v761, %v1332
  %v1334 = vpop.f32.mrf.mxu0
  %1335 = vmatprep.mubr.f32.mxu0 0.0
  %1336 = vmatmul.mubr.f32.gmra.mxu0 %v954
  %v1337 = vpop.f32.mrf.mxu0
  %v1338 = vadd.f32 %v761, %v1337
  %v1339 = vpop.f32.mrf.mxu0
  %1340 = vdwg.mxu0
  %v1341 = vmax.f32 %v1023, 0.0
  %v1342 = vmax.f32 %v1028, 0.0
  %v1343 = vmax.f32 %v1033, 0.0
  %v1344 = vmax.f32 %v1038, 0.0
  %v1345 = vmax.f32 %v1043, 0.0
  %v1346 = vmax.f32 %v1048, 0.0
  %v1347 = vmax.f32 %v1053, 0.0
  %v1348 = vmax.f32 %v1058, 0.0
  %v1349 = vmax.f32 %v1063, 0.0
  %v1350 = vmax.f32 %v1068, 0.0
  %v1351 = vmax.f32 %v1073, 0.0
  %v1352 = vmax.f32 %v1078, 0.0
  %v1353 = vmax.f32 %v1083, 0.0
  %v1354 = vmax.f32 %v1088, 0.0
  %v1355 = vmax.f32 %v1093, 0.0
  %v1356 = vmax.f32 %v1098, 0.0
  %v1357 = vmax.f32 %v1103, 0.0
  %v1358 = vmax.f32 %v1108, 0.0
  %v1359 = vmax.f32 %v1113, 0.0
  %v1360 = vmax.f32 %v1118, 0.0
  %v1361 = vmax.f32 %v1123, 0.0
  %v1362 = vmax.f32 %v1128, 0.0
  %v1363 = vmax.f32 %v1133, 0.0
  %v1364 = vmax.f32 %v1138, 0.0
  %v1365 = vmax.f32 %v1143, 0.0
  %v1366 = vmax.f32 %v1148, 0.0
  %v1367 = vmax.f32 %v1153, 0.0
  %v1368 = vmax.f32 %v1158, 0.0
  %v1369 = vmax.f32 %v1163, 0.0
  %v1370 = vmax.f32 %v1168, 0.0
  %v1371 = vmax.f32 %v1173, 0.0
  %v1372 = vmax.f32 %v1178, 0.0
  %v1373 = vmax.f32 %v1183, 0.0
  %v1374 = vmax.f32 %v1188, 0.0
  %v1375 = vmax.f32 %v1193, 0.0
  %v1376 = vmax.f32 %v1198, 0.0
  %v1377 = vmax.f32 %v1203, 0.0
  %v1378 = vmax.f32 %v1208, 0.0
  %v1379 = vmax.f32 %v1213, 0.0
  %v1380 = vmax.f32 %v1218, 0.0
  %v1381 = vmax.f32 %v1223, 0.0
  %v1382 = vmax.f32 %v1228, 0.0
  %v1383 = vmax.f32 %v1233, 0.0
  %v1384 = vmax.f32 %v1238, 0.0
  %v1385 = vmax.f32 %v1243, 0.0
  %v1386 = vmax.f32 %v1248, 0.0
  %v1387 = vmax.f32 %v1253, 0.0
  %v1388 = vmax.f32 %v1258, 0.0
  %v1389 = vmax.f32 %v1263, 0.0
  %v1390 = vmax.f32 %v1268, 0.0
  %v1391 = vmax.f32 %v1273, 0.0
  %v1392 = vmax.f32 %v1278, 0.0
  %v1393 = vmax.f32 %v1283, 0.0
  %v1394 = vmax.f32 %v1288, 0.0
  %v1395 = vmax.f32 %v1293, 0.0
  %v1396 = vmax.f32 %v1298, 0.0
  %v1397 = vmax.f32 %v1303, 0.0
  %v1398 = vmax.f32 %v1308, 0.0
  %v1399 = vmax.f32 %v1313, 0.0
  %v1400 = vmax.f32 %v1318, 0.0
  %v1401 = vmax.f32 %v1323, 0.0
  %v1402 = vmax.f32 %v1328, 0.0
  %v1403 = vmax.f32 %v1333, 0.0
  %v1404 = vmax.f32 %v1338, 0.0
  %v1405 = vmax.f32 %v1342, 0.0
  %v1406 = vmax.f32 %v1342, %v1344
  %v1407 = vmax.f32 %v1344, %v1346
  %v1408 = vmax.f32 %v1346, %v1348
  %v1409 = vmax.f32 %v1350, 0.0
  %v1410 = vmax.f32 %v1350, %v1352
  %v1411 = vmax.f32 %v1352, %v1354
  %v1412 = vmax.f32 %v1354, %v1356
  %v1413 = vmax.f32 %v1358, 0.0
  %v1414 = vmax.f32 %v1358, %v1360
  %v1415 = vmax.f32 %v1360, %v1362
  %v1416 = vmax.f32 %v1362, %v1364
  %v1417 = vmax.f32 %v1366, 0.0
  %v1418 = vmax.f32 %v1366, %v1368
  %v1419 = vmax.f32 %v1368, %v1370
  %v1420 = vmax.f32 %v1370, %v1372
  %v1421 = vmax.f32 %v1374, 0.0
  %v1422 = vmax.f32 %v1374, %v1376
  %v1423 = vmax.f32 %v1376, %v1378
  %v1424 = vmax.f32 %v1378, %v1380
  %v1425 = vmax.f32 %v1382, 0.0
  %v1426 = vmax.f32 %v1382, %v1384
  %v1427 = vmax.f32 %v1384, %v1386
  %v1428 = vmax.f32 %v1386, %v1388
  %v1429 = vmax.f32 %v1390, 0.0
  %v1430 = vmax.f32 %v1390, %v1392
  %v1431 = vmax.f32 %v1392, %v1394
  %v1432 = vmax.f32 %v1394, %v1396
  %v1433 = vmax.f32 %v1398, 0.0
  %v1434 = vmax.f32 %v1398, %v1400
  %v1435 = vmax.f32 %v1400, %v1402
  %v1436 = vmax.f32 %v1402, %v1404
  %v1437 = vmax.f32 %v1341, %v1405
  %v1438 = vmax.f32 %v1343, %v1406
  %v1439 = vmax.f32 %v1345, %v1407
  %v1440 = vmax.f32 %v1347, %v1408
  %v1441 = vmax.f32 %v1349, %v1409
  %v1442 = vmax.f32 %v1351, %v1410
  %v1443 = vmax.f32 %v1353, %v1411
  %v1444 = vmax.f32 %v1355, %v1412
  %v1445 = vmax.f32 %v1357, %v1413
  %v1446 = vmax.f32 %v1359, %v1414
  %v1447 = vmax.f32 %v1361, %v1415
  %v1448 = vmax.f32 %v1363, %v1416
  %v1449 = vmax.f32 %v1365, %v1417
  %v1450 = vmax.f32 %v1367, %v1418
  %v1451 = vmax.f32 %v1369, %v1419
  %v1452 = vmax.f32 %v1371, %v1420
  %v1453 = vmax.f32 %v1373, %v1421
  %v1454 = vmax.f32 %v1375, %v1422
  %v1455 = vmax.f32 %v1377, %v1423
  %v1456 = vmax.f32 %v1379, %v1424
  %v1457 = vmax.f32 %v1381, %v1425
  %v1458 = vmax.f32 %v1383, %v1426
  %v1459 = vmax.f32 %v1385, %v1427
  %v1460 = vmax.f32 %v1387, %v1428
  %v1461 = vmax.f32 %v1389, %v1429
  %v1462 = vmax.f32 %v1391, %v1430
  %v1463 = vmax.f32 %v1393, %v1431
  %v1464 = vmax.f32 %v1395, %v1432
  %v1465 = vmax.f32 %v1397, %v1433
  %v1466 = vmax.f32 %v1399, %v1434
  %v1467 = vmax.f32 %v1401, %v1435
  %v1468 = vmax.f32 %v1403, %v1436
  %v1469 = vmax.f32 %v1441, 0.0
  %v1470 = vmax.f32 %v1442, 0.0
  %v1471 = vmax.f32 %v1443, 0.0
  %v1472 = vmax.f32 %v1444, 0.0
  %v1473 = vmax.f32 %v1441, %v1449
  %v1474 = vmax.f32 %v1442, %v1450
  %v1475 = vmax.f32 %v1443, %v1451
  %v1476 = vmax.f32 %v1444, %v1452
  %v1477 = vmax.f32 %v1449, %v1457
  %v1478 = vmax.f32 %v1450, %v1458
  %v1479 = vmax.f32 %v1451, %v1459
  %v1480 = vmax.f32 %v1452, %v1460
  %v1481 = vmax.f32 %v1457, %v1465
  %v1482 = vmax.f32 %v1458, %v1466
  %v1483 = vmax.f32 %v1459, %v1467
  %v1484 = vmax.f32 %v1460, %v1468
  %v1485 = vmax.f32 %v1437, %v1469
  %v1486 = vmax.f32 %v1438, %v1470
  %v1487 = vmax.f32 %v1439, %v1471
  %v1488 = vmax.f32 %v1440, %v1472
  %v1489 = vmax.f32 %v1445, %v1473
  %v1490 = vmax.f32 %v1446, %v1474
  %v1491 = vmax.f32 %v1447, %v1475
  %v1492 = vmax.f32 %v1448, %v1476
  %v1493 = vmax.f32 %v1453, %v1477
  %v1494 = vmax.f32 %v1454, %v1478
  %v1495 = vmax.f32 %v1455, %v1479
  %v1496 = vmax.f32 %v1456, %v1480
  %v1497 = vmax.f32 %v1461, %v1481
  %v1498 = vmax.f32 %v1462, %v1482
  %v1499 = vmax.f32 %v1463, %v1483
  %v1500 = vmax.f32 %v1464, %v1484
  %v1501 = vld [vmem:[%s5] sm:$0xff]
  %v1502 = vld [vmem:[%s5 + $0x8] sm:$0xff]
  %v1503 = vld [vmem:[%s5 + $0x10] sm:$0xff]
  %v1504 = vld [vmem:[%s5 + $0x18] sm:$0xff]
  %v1505 = vld [vmem:[%s5 + $0x20] sm:$0xff]
  %v1506 = vld [vmem:[%s5 + $0x28] sm:$0xff]
  %v1507 = vld [vmem:[%s5 + $0x30] sm:$0xff]
  %v1508 = vld [vmem:[%s5 + $0x38] sm:$0xff]
  %v1509 = vld [vmem:[%s5 + $0x40] sm:$0xff]
  %v1510 = vld [vmem:[%s5 + $0x48] sm:$0xff]
  %v1511 = vld [vmem:[%s5 + $0x50] sm:$0xff]
  %v1512 = vld [vmem:[%s5 + $0x58] sm:$0xff]
  %v1513 = vld [vmem:[%s5 + $0x60] sm:$0xff]
  %v1514 = vld [vmem:[%s5 + $0x68] sm:$0xff]
  %v1515 = vld [vmem:[%s5 + $0x70] sm:$0xff]
  %v1516 = vld [vmem:[%s5 + $0x78] sm:$0xff]
  %v1517 = vld [vmem:[%s5 + $0x80] sm:$0xff]
  %v1518 = vld [vmem:[%s5 + $0x88] sm:$0xff]
  %v1519 = vld [vmem:[%s5 + $0x90] sm:$0xff]
  %v1520 = vld [vmem:[%s5 + $0x98] sm:$0xff]
  %v1521 = vld [vmem:[%s5 + $0xa0] sm:$0xff]
  %v1522 = vld [vmem:[%s5 + $0xa8] sm:$0xff]
  %v1523 = vld [vmem:[%s5 + $0xb0] sm:$0xff]
  %v1524 = vld [vmem:[%s5 + $0xb8] sm:$0xff]
  %v1525 = vld [vmem:[%s5 + $0xc0] sm:$0xff]
  %v1526 = vld [vmem:[%s5 + $0xc8] sm:$0xff]
  %v1527 = vld [vmem:[%s5 + $0xd0] sm:$0xff]
  %v1528 = vld [vmem:[%s5 + $0xd8] sm:$0xff]
  %v1529 = vld [vmem:[%s5 + $0xe0] sm:$0xff]
  %v1530 = vld [vmem:[%s5 + $0xe8] sm:$0xff]
  %v1531 = vld [vmem:[%s5 + $0xf0] sm:$0xff]
  %v1532 = vld [vmem:[%s5 + $0xf8] sm:$0xff]
  %v1533 = vld [vmem:[%s5 + $0x100] sm:$0xff]
  %v1534 = vld [vmem:[%s5 + $0x108] sm:$0xff]
  %v1535 = vld [vmem:[%s5 + $0x110] sm:$0xff]
  %v1536 = vld [vmem:[%s5 + $0x118] sm:$0xff]
  %v1537 = vld [vmem:[%s5 + $0x120] sm:$0xff]
  %v1538 = vld [vmem:[%s5 + $0x128] sm:$0xff]
  %v1539 = vld [vmem:[%s5 + $0x130] sm:$0xff]
  %v1540 = vld [vmem:[%s5 + $0x138] sm:$0xff]
  %v1541 = vld [vmem:[%s5 + $0x140] sm:$0xff]
  %v1542 = vld [vmem:[%s5 + $0x148] sm:$0xff]
  %v1543 = vld [vmem:[%s5 + $0x150] sm:$0xff]
  %v1544 = vld [vmem:[%s5 + $0x158] sm:$0xff]
  %v1545 = vld [vmem:[%s5 + $0x160] sm:$0xff]
  %v1546 = vld [vmem:[%s5 + $0x168] sm:$0xff]
  %v1547 = vld [vmem:[%s5 + $0x170] sm:$0xff]
  %v1548 = vld [vmem:[%s5 + $0x178] sm:$0xff]
  %v1549 = vld [vmem:[%s5 + $0x180] sm:$0xff]
  %v1550 = vld [vmem:[%s5 + $0x188] sm:$0xff]
  %v1551 = vld [vmem:[%s5 + $0x190] sm:$0xff]
  %v1552 = vld [vmem:[%s5 + $0x198] sm:$0xff]
  %v1553 = vld [vmem:[%s5 + $0x1a0] sm:$0xff]
  %v1554 = vld [vmem:[%s5 + $0x1a8] sm:$0xff]
  %v1555 = vld [vmem:[%s5 + $0x1b0] sm:$0xff]
  %v1556 = vld [vmem:[%s5 + $0x1b8] sm:$0xff]
  %v1557 = vld [vmem:[%s5 + $0x1c0] sm:$0xff]
  %v1558 = vld [vmem:[%s5 + $0x1c8] sm:$0xff]
  %v1559 = vld [vmem:[%s5 + $0x1d0] sm:$0xff]
  %v1560 = vld [vmem:[%s5 + $0x1d8] sm:$0xff]
  %v1561 = vld [vmem:[%s5 + $0x1e0] sm:$0xff]
  %v1562 = vld [vmem:[%s5 + $0x1e8] sm:$0xff]
  %v1563 = vld [vmem:[%s5 + $0x1f0] sm:$0xff]
  %v1564 = vld [vmem:[%s5 + $0x1f8] sm:$0xff]
  %vm1565 = vcmask 261120
  %v1567 = vsel %vm1565, %v1485, 0
  %1569 = vmatprep.subr.mxu0 0.0
  %1570 = vmatpush1.msra.mxu0 0.0
  %1571 = vmatprep.subr.mxu0 0.0
  %1572 = vmatpush1.msra.mxu0 0.0
  %1573 = vmatprep.subr.mxu0 0.0
  %1574 = vmatpush1.msra.mxu0 0.0
  %1575 = vmatprep.subr.mxu0 0.0
  %1576 = vmatpush1.msra.mxu0 0.0
  %1577 = vmatprep.subr.mxu0 0.0
  %1578 = vmatpush1.msra.mxu0 0.0
  %1579 = vmatprep.subr.mxu0 0.0
  %1580 = vmatpush1.msra.mxu0 0.0
  %1581 = vmatprep.subr.mxu0 0.0
  %1582 = vmatpush1.msra.mxu0 0.0
  %1583 = vmatprep.subr.mxu0 0.0
  %1584 = vmatpush1.msra.mxu0 0.0
  %1585 = vmatprep.subr.mxu0 0.0
  %1586 = vmatpush1.msra.mxu0 0.0
  %1587 = vmatprep.subr.mxu0 0.0
  %1588 = vmatpush1.msra.mxu0 0.0
  %1589 = vmatprep.subr.mxu0 0.0
  %1590 = vmatpush1.msra.mxu0 0.0
  %1591 = vmatprep.subr.mxu0 0.0
  %1592 = vmatpush1.msra.mxu0 0.0
  %1593 = vmatprep.subr.mxu0 0.0
  %1594 = vmatpush1.msra.mxu0 %v1504
  %1595 = vmatprep.subr.mxu0 0.0
  %1596 = vmatpush1.msra.mxu0 %v1503
  %1597 = vmatprep.subr.mxu0 0.0
  %1598 = vmatpush1.msra.mxu0 %v1502
  %1599 = vmatprep.subr.mxu0 0.0
  %1600 = vmatpush1.msra.mxu0 %v1501
  %1601 = vmatprep.subr.mxu0 0.0
  %1602 = vmatpush2.msra.mxu0 0.0
  %1603 = vmatprep.subr.mxu0 0.0
  %1604 = vmatpush2.msra.mxu0 0.0
  %1605 = vmatprep.subr.mxu0 0.0
  %1606 = vmatpush2.msra.mxu0 0.0
  %1607 = vmatprep.subr.mxu0 0.0
  %1608 = vmatpush2.msra.mxu0 0.0
  %1609 = vmatprep.subr.mxu0 0.0
  %1610 = vmatpush2.msra.mxu0 0.0
  %1611 = vmatprep.subr.mxu0 0.0
  %1612 = vmatpush2.msra.mxu0 0.0
  %1613 = vmatprep.subr.mxu0 0.0
  %1614 = vmatpush2.msra.mxu0 0.0
  %1615 = vmatprep.subr.mxu0 0.0
  %1616 = vmatpush2.msra.mxu0 0.0
  %1617 = vmatprep.subr.mxu0 0.0
  %1618 = vmatpush2.msra.mxu0 0.0
  %1619 = vmatprep.subr.mxu0 0.0
  %1620 = vmatpush2.msra.mxu0 0.0
  %1621 = vmatprep.subr.mxu0 0.0
  %1622 = vmatpush2.msra.mxu0 0.0
  %1623 = vmatprep.subr.mxu0 0.0
  %1624 = vmatpush2.msra.mxu0 0.0
  %1625 = vmatprep.subr.mxu0 0.0
  %1626 = vmatpush2.msra.mxu0 0.0
  %1627 = vmatprep.subr.mxu0 0.0
  %1628 = vmatpush2.msra.mxu0 0.0
  %1629 = vmatprep.subr.mxu0 0.0
  %1630 = vmatpush2.msra.mxu0 0.0
  %1631 = vmatprep.subr.mxu0 0.0
  %1632 = vmatpush2.msra.mxu0 0.0
  %1633 = vmatprep.mubr.f32.mxu0 0.0
  %1634 = vmatmul.mubr.f32.gmra.mxu0 %v1567
  %v1635 = vpop.f32.mrf.mxu0
  %v1636 = vadd.f32 0.0, %v1635
  %v1637 = vpop.f32.mrf.mxu0
  %1638 = vdwg.mxu0
  %v1640 = vsel %vm1565, %v1486, 0
  %1642 = vmatprep.subr.mxu0 0.0
  %1643 = vmatpush1.msra.mxu0 0.0
  %1644 = vmatprep.subr.mxu0 0.0
  %1645 = vmatpush1.msra.mxu0 0.0
  %1646 = vmatprep.subr.mxu0 0.0
  %1647 = vmatpush1.msra.mxu0 0.0
  %1648 = vmatprep.subr.mxu0 0.0
  %1649 = vmatpush1.msra.mxu0 0.0
  %1650 = vmatprep.subr.mxu0 0.0
  %1651 = vmatpush1.msra.mxu0 0.0
  %1652 = vmatprep.subr.mxu0 0.0
  %1653 = vmatpush1.msra.mxu0 0.0
  %1654 = vmatprep.subr.mxu0 0.0
  %1655 = vmatpush1.msra.mxu0 0.0
  %1656 = vmatprep.subr.mxu0 0.0
  %1657 = vmatpush1.msra.mxu0 0.0
  %1658 = vmatprep.subr.mxu0 0.0
  %1659 = vmatpush1.msra.mxu0 0.0
  %1660 = vmatprep.subr.mxu0 0.0
  %1661 = vmatpush1.msra.mxu0 0.0
  %1662 = vmatprep.subr.mxu0 0.0
  %1663 = vmatpush1.msra.mxu0 0.0
  %1664 = vmatprep.subr.mxu0 0.0
  %1665 = vmatpush1.msra.mxu0 0.0
  %1666 = vmatprep.subr.mxu0 0.0
  %1667 = vmatpush1.msra.mxu0 %v1508
  %1668 = vmatprep.subr.mxu0 0.0
  %1669 = vmatpush1.msra.mxu0 %v1507
  %1670 = vmatprep.subr.mxu0 0.0
  %1671 = vmatpush1.msra.mxu0 %v1506
  %1672 = vmatprep.subr.mxu0 0.0
  %1673 = vmatpush1.msra.mxu0 %v1505
  %1674 = vmatprep.subr.mxu0 0.0
  %1675 = vmatpush2.msra.mxu0 0.0
  %1676 = vmatprep.subr.mxu0 0.0
  %1677 = vmatpush2.msra.mxu0 0.0
  %1678 = vmatprep.subr.mxu0 0.0
  %1679 = vmatpush2.msra.mxu0 0.0
  %1680 = vmatprep.subr.mxu0 0.0
  %1681 = vmatpush2.msra.mxu0 0.0
  %1682 = vmatprep.subr.mxu0 0.0
  %1683 = vmatpush2.msra.mxu0 0.0
  %1684 = vmatprep.subr.mxu0 0.0
  %1685 = vmatpush2.msra.mxu0 0.0
  %1686 = vmatprep.subr.mxu0 0.0
  %1687 = vmatpush2.msra.mxu0 0.0
  %1688 = vmatprep.subr.mxu0 0.0
  %1689 = vmatpush2.msra.mxu0 0.0
  %1690 = vmatprep.subr.mxu0 0.0
  %1691 = vmatpush2.msra.mxu0 0.0
  %1692 = vmatprep.subr.mxu0 0.0
  %1693 = vmatpush2.msra.mxu0 0.0
  %1694 = vmatprep.subr.mxu0 0.0
  %1695 = vmatpush2.msra.mxu0 0.0
  %1696 = vmatprep.subr.mxu0 0.0
  %1697 = vmatpush2.msra.mxu0 0.0
  %1698 = vmatprep.subr.mxu0 0.0
  %1699 = vmatpush2.msra.mxu0 0.0
  %1700 = vmatprep.subr.mxu0 0.0
  %1701 = vmatpush2.msra.mxu0 0.0
  %1702 = vmatprep.subr.mxu0 0.0
  %1703 = vmatpush2.msra.mxu0 0.0
  %1704 = vmatprep.subr.mxu0 0.0
  %1705 = vmatpush2.msra.mxu0 0.0
  %1706 = vmatprep.mubr.f32.mxu0 0.0
  %1707 = vmatmul.mubr.f32.gmra.mxu0 %v1640
  %v1708 = vpop.f32.mrf.mxu0
  %v1709 = vadd.f32 0.0, %v1708
  %v1710 = vpop.f32.mrf.mxu0
  %1711 = vdwg.mxu0
  %v1713 = vsel %vm1565, %v1487, 0
  %1715 = vmatprep.subr.mxu0 0.0
  %1716 = vmatpush1.msra.mxu0 0.0
  %1717 = vmatprep.subr.mxu0 0.0
  %1718 = vmatpush1.msra.mxu0 0.0
  %1719 = vmatprep.subr.mxu0 0.0
  %1720 = vmatpush1.msra.mxu0 0.0
  %1721 = vmatprep.subr.mxu0 0.0
  %1722 = vmatpush1.msra.mxu0 0.0
  %1723 = vmatprep.subr.mxu0 0.0
  %1724 = vmatpush1.msra.mxu0 0.0
  %1725 = vmatprep.subr.mxu0 0.0
  %1726 = vmatpush1.msra.mxu0 0.0
  %1727 = vmatprep.subr.mxu0 0.0
  %1728 = vmatpush1.msra.mxu0 0.0
  %1729 = vmatprep.subr.mxu0 0.0
  %1730 = vmatpush1.msra.mxu0 0.0
  %1731 = vmatprep.subr.mxu0 0.0
  %1732 = vmatpush1.msra.mxu0 0.0
  %1733 = vmatprep.subr.mxu0 0.0
  %1734 = vmatpush1.msra.mxu0 0.0
  %1735 = vmatprep.subr.mxu0 0.0
  %1736 = vmatpush1.msra.mxu0 0.0
  %1737 = vmatprep.subr.mxu0 0.0
  %1738 = vmatpush1.msra.mxu0 0.0
  %1739 = vmatprep.subr.mxu0 0.0
  %1740 = vmatpush1.msra.mxu0 %v1512
  %1741 = vmatprep.subr.mxu0 0.0
  %1742 = vmatpush1.msra.mxu0 %v1511
  %1743 = vmatprep.subr.mxu0 0.0
  %1744 = vmatpush1.msra.mxu0 %v1510
  %1745 = vmatprep.subr.mxu0 0.0
  %1746 = vmatpush1.msra.mxu0 %v1509
  %1747 = vmatprep.subr.mxu0 0.0
  %1748 = vmatpush2.msra.mxu0 0.0
  %1749 = vmatprep.subr.mxu0 0.0
  %1750 = vmatpush2.msra.mxu0 0.0
  %1751 = vmatprep.subr.mxu0 0.0
  %1752 = vmatpush2.msra.mxu0 0.0
  %1753 = vmatprep.subr.mxu0 0.0
  %1754 = vmatpush2.msra.mxu0 0.0
  %1755 = vmatprep.subr.mxu0 0.0
  %1756 = vmatpush2.msra.mxu0 0.0
  %1757 = vmatprep.subr.mxu0 0.0
  %1758 = vmatpush2.msra.mxu0 0.0
  %1759 = vmatprep.subr.mxu0 0.0
  %1760 = vmatpush2.msra.mxu0 0.0
  %1761 = vmatprep.subr.mxu0 0.0
  %1762 = vmatpush2.msra.mxu0 0.0
  %1763 = vmatprep.subr.mxu0 0.0
  %1764 = vmatpush2.msra.mxu0 0.0
  %1765 = vmatprep.subr.mxu0 0.0
  %1766 = vmatpush2.msra.mxu0 0.0
  %1767 = vmatprep.subr.mxu0 0.0
  %1768 = vmatpush2.msra.mxu0 0.0
  %1769 = vmatprep.subr.mxu0 0.0
  %1770 = vmatpush2.msra.mxu0 0.0
  %1771 = vmatprep.subr.mxu0 0.0
  %1772 = vmatpush2.msra.mxu0 0.0
  %1773 = vmatprep.subr.mxu0 0.0
  %1774 = vmatpush2.msra.mxu0 0.0
  %1775 = vmatprep.subr.mxu0 0.0
  %1776 = vmatpush2.msra.mxu0 0.0
  %1777 = vmatprep.subr.mxu0 0.0
  %1778 = vmatpush2.msra.mxu0 0.0
  %1779 = vmatprep.mubr.f32.mxu0 0.0
  %1780 = vmatmul.mubr.f32.gmra.mxu0 %v1713
  %v1781 = vpop.f32.mrf.mxu0
  %v1782 = vadd.f32 0.0, %v1781
  %v1783 = vpop.f32.mrf.mxu0
  %1784 = vdwg.mxu0
  %v1786 = vsel %vm1565, %v1488, 0
  %1788 = vmatprep.subr.mxu0 0.0
  %1789 = vmatpush1.msra.mxu0 0.0
  %1790 = vmatprep.subr.mxu0 0.0
  %1791 = vmatpush1.msra.mxu0 0.0
  %1792 = vmatprep.subr.mxu0 0.0
  %1793 = vmatpush1.msra.mxu0 0.0
  %1794 = vmatprep.subr.mxu0 0.0
  %1795 = vmatpush1.msra.mxu0 0.0
  %1796 = vmatprep.subr.mxu0 0.0
  %1797 = vmatpush1.msra.mxu0 0.0
  %1798 = vmatprep.subr.mxu0 0.0
  %1799 = vmatpush1.msra.mxu0 0.0
  %1800 = vmatprep.subr.mxu0 0.0
  %1801 = vmatpush1.msra.mxu0 0.0
  %1802 = vmatprep.subr.mxu0 0.0
  %1803 = vmatpush1.msra.mxu0 0.0
  %1804 = vmatprep.subr.mxu0 0.0
  %1805 = vmatpush1.msra.mxu0 0.0
  %1806 = vmatprep.subr.mxu0 0.0
  %1807 = vmatpush1.msra.mxu0 0.0
  %1808 = vmatprep.subr.mxu0 0.0
  %1809 = vmatpush1.msra.mxu0 0.0
  %1810 = vmatprep.subr.mxu0 0.0
  %1811 = vmatpush1.msra.mxu0 0.0
  %1812 = vmatprep.subr.mxu0 0.0
  %1813 = vmatpush1.msra.mxu0 %v1516
  %1814 = vmatprep.subr.mxu0 0.0
  %1815 = vmatpush1.msra.mxu0 %v1515
  %1816 = vmatprep.subr.mxu0 0.0
  %1817 = vmatpush1.msra.mxu0 %v1514
  %1818 = vmatprep.subr.mxu0 0.0
  %1819 = vmatpush1.msra.mxu0 %v1513
  %1820 = vmatprep.subr.mxu0 0.0
  %1821 = vmatpush2.msra.mxu0 0.0
  %1822 = vmatprep.subr.mxu0 0.0
  %1823 = vmatpush2.msra.mxu0 0.0
  %1824 = vmatprep.subr.mxu0 0.0
  %1825 = vmatpush2.msra.mxu0 0.0
  %1826 = vmatprep.subr.mxu0 0.0
  %1827 = vmatpush2.msra.mxu0 0.0
  %1828 = vmatprep.subr.mxu0 0.0
  %1829 = vmatpush2.msra.mxu0 0.0
  %1830 = vmatprep.subr.mxu0 0.0
  %1831 = vmatpush2.msra.mxu0 0.0
  %1832 = vmatprep.subr.mxu0 0.0
  %1833 = vmatpush2.msra.mxu0 0.0
  %1834 = vmatprep.subr.mxu0 0.0
  %1835 = vmatpush2.msra.mxu0 0.0
  %1836 = vmatprep.subr.mxu0 0.0
  %1837 = vmatpush2.msra.mxu0 0.0
  %1838 = vmatprep.subr.mxu0 0.0
  %1839 = vmatpush2.msra.mxu0 0.0
  %1840 = vmatprep.subr.mxu0 0.0
  %1841 = vmatpush2.msra.mxu0 0.0
  %1842 = vmatprep.subr.mxu0 0.0
  %1843 = vmatpush2.msra.mxu0 0.0
  %1844 = vmatprep.subr.mxu0 0.0
  %1845 = vmatpush2.msra.mxu0 0.0
  %1846 = vmatprep.subr.mxu0 0.0
  %1847 = vmatpush2.msra.mxu0 0.0
  %1848 = vmatprep.subr.mxu0 0.0
  %1849 = vmatpush2.msra.mxu0 0.0
  %1850 = vmatprep.subr.mxu0 0.0
  %1851 = vmatpush2.msra.mxu0 0.0
  %1852 = vmatprep.mubr.f32.mxu0 0.0
  %1853 = vmatmul.mubr.f32.gmra.mxu0 %v1786
  %v1854 = vpop.f32.mrf.mxu0
  %v1855 = vadd.f32 0.0, %v1854
  %v1856 = vpop.f32.mrf.mxu0
  %1857 = vdwg.mxu0
  %v1859 = vsel %vm1565, %v1489, 0
  %1861 = vmatprep.subr.mxu0 0.0
  %1862 = vmatpush1.msra.mxu0 0.0
  %1863 = vmatprep.subr.mxu0 0.0
  %1864 = vmatpush1.msra.mxu0 0.0
  %1865 = vmatprep.subr.mxu0 0.0
  %1866 = vmatpush1.msra.mxu0 0.0
  %1867 = vmatprep.subr.mxu0 0.0
  %1868 = vmatpush1.msra.mxu0 0.0
  %1869 = vmatprep.subr.mxu0 0.0
  %1870 = vmatpush1.msra.mxu0 0.0
  %1871 = vmatprep.subr.mxu0 0.0
  %1872 = vmatpush1.msra.mxu0 0.0
  %1873 = vmatprep.subr.mxu0 0.0
  %1874 = vmatpush1.msra.mxu0 0.0
  %1875 = vmatprep.subr.mxu0 0.0
  %1876 = vmatpush1.msra.mxu0 0.0
  %1877 = vmatprep.subr.mxu0 0.0
  %1878 = vmatpush1.msra.mxu0 0.0
  %1879 = vmatprep.subr.mxu0 0.0
  %1880 = vmatpush1.msra.mxu0 0.0
  %1881 = vmatprep.subr.mxu0 0.0
  %1882 = vmatpush1.msra.mxu0 0.0
  %1883 = vmatprep.subr.mxu0 0.0
  %1884 = vmatpush1.msra.mxu0 0.0
  %1885 = vmatprep.subr.mxu0 0.0
  %1886 = vmatpush1.msra.mxu0 %v1520
  %1887 = vmatprep.subr.mxu0 0.0
  %1888 = vmatpush1.msra.mxu0 %v1519
  %1889 = vmatprep.subr.mxu0 0.0
  %1890 = vmatpush1.msra.mxu0 %v1518
  %1891 = vmatprep.subr.mxu0 0.0
  %1892 = vmatpush1.msra.mxu0 %v1517
  %1893 = vmatprep.subr.mxu0 0.0
  %1894 = vmatpush2.msra.mxu0 0.0
  %1895 = vmatprep.subr.mxu0 0.0
  %1896 = vmatpush2.msra.mxu0 0.0
  %1897 = vmatprep.subr.mxu0 0.0
  %1898 = vmatpush2.msra.mxu0 0.0
  %1899 = vmatprep.subr.mxu0 0.0
  %1900 = vmatpush2.msra.mxu0 0.0
  %1901 = vmatprep.subr.mxu0 0.0
  %1902 = vmatpush2.msra.mxu0 0.0
  %1903 = vmatprep.subr.mxu0 0.0
  %1904 = vmatpush2.msra.mxu0 0.0
  %1905 = vmatprep.subr.mxu0 0.0
  %1906 = vmatpush2.msra.mxu0 0.0
  %1907 = vmatprep.subr.mxu0 0.0
  %1908 = vmatpush2.msra.mxu0 0.0
  %1909 = vmatprep.subr.mxu0 0.0
  %1910 = vmatpush2.msra.mxu0 0.0
  %1911 = vmatprep.subr.mxu0 0.0
  %1912 = vmatpush2.msra.mxu0 0.0
  %1913 = vmatprep.subr.mxu0 0.0
  %1914 = vmatpush2.msra.mxu0 0.0
  %1915 = vmatprep.subr.mxu0 0.0
  %1916 = vmatpush2.msra.mxu0 0.0
  %1917 = vmatprep.subr.mxu0 0.0
  %1918 = vmatpush2.msra.mxu0 0.0
  %1919 = vmatprep.subr.mxu0 0.0
  %1920 = vmatpush2.msra.mxu0 0.0
  %1921 = vmatprep.subr.mxu0 0.0
  %1922 = vmatpush2.msra.mxu0 0.0
  %1923 = vmatprep.subr.mxu0 0.0
  %1924 = vmatpush2.msra.mxu0 0.0
  %1925 = vmatprep.mubr.f32.mxu0 0.0
  %1926 = vmatmul.mubr.f32.gmra.mxu0 %v1859
  %v1927 = vpop.f32.mrf.mxu0
  %v1928 = vadd.f32 0.0, %v1927
  %v1929 = vpop.f32.mrf.mxu0
  %1930 = vdwg.mxu0
  %v1932 = vsel %vm1565, %v1490, 0
  %1934 = vmatprep.subr.mxu0 0.0
  %1935 = vmatpush1.msra.mxu0 0.0
  %1936 = vmatprep.subr.mxu0 0.0
  %1937 = vmatpush1.msra.mxu0 0.0
  %1938 = vmatprep.subr.mxu0 0.0
  %1939 = vmatpush1.msra.mxu0 0.0
  %1940 = vmatprep.subr.mxu0 0.0
  %1941 = vmatpush1.msra.mxu0 0.0
  %1942 = vmatprep.subr.mxu0 0.0
  %1943 = vmatpush1.msra.mxu0 0.0
  %1944 = vmatprep.subr.mxu0 0.0
  %1945 = vmatpush1.msra.mxu0 0.0
  %1946 = vmatprep.subr.mxu0 0.0
  %1947 = vmatpush1.msra.mxu0 0.0
  %1948 = vmatprep.subr.mxu0 0.0
  %1949 = vmatpush1.msra.mxu0 0.0
  %1950 = vmatprep.subr.mxu0 0.0
  %1951 = vmatpush1.msra.mxu0 0.0
  %1952 = vmatprep.subr.mxu0 0.0
  %1953 = vmatpush1.msra.mxu0 0.0
  %1954 = vmatprep.subr.mxu0 0.0
  %1955 = vmatpush1.msra.mxu0 0.0
  %1956 = vmatprep.subr.mxu0 0.0
  %1957 = vmatpush1.msra.mxu0 0.0
  %1958 = vmatprep.subr.mxu0 0.0
  %1959 = vmatpush1.msra.mxu0 %v1524
  %1960 = vmatprep.subr.mxu0 0.0
  %1961 = vmatpush1.msra.mxu0 %v1523
  %1962 = vmatprep.subr.mxu0 0.0
  %1963 = vmatpush1.msra.mxu0 %v1522
  %1964 = vmatprep.subr.mxu0 0.0
  %1965 = vmatpush1.msra.mxu0 %v1521
  %1966 = vmatprep.subr.mxu0 0.0
  %1967 = vmatpush2.msra.mxu0 0.0
  %1968 = vmatprep.subr.mxu0 0.0
  %1969 = vmatpush2.msra.mxu0 0.0
  %1970 = vmatprep.subr.mxu0 0.0
  %1971 = vmatpush2.msra.mxu0 0.0
  %1972 = vmatprep.subr.mxu0 0.0
  %1973 = vmatpush2.msra.mxu0 0.0
  %1974 = vmatprep.subr.mxu0 0.0
  %1975 = vmatpush2.msra.mxu0 0.0
  %1976 = vmatprep.subr.mxu0 0.0
  %1977 = vmatpush2.msra.mxu0 0.0
  %1978 = vmatprep.subr.mxu0 0.0
  %1979 = vmatpush2.msra.mxu0 0.0
  %1980 = vmatprep.subr.mxu0 0.0
  %1981 = vmatpush2.msra.mxu0 0.0
  %1982 = vmatprep.subr.mxu0 0.0
  %1983 = vmatpush2.msra.mxu0 0.0
  %1984 = vmatprep.subr.mxu0 0.0
  %1985 = vmatpush2.msra.mxu0 0.0
  %1986 = vmatprep.subr.mxu0 0.0
  %1987 = vmatpush2.msra.mxu0 0.0
  %1988 = vmatprep.subr.mxu0 0.0
  %1989 = vmatpush2.msra.mxu0 0.0
  %1990 = vmatprep.subr.mxu0 0.0
  %1991 = vmatpush2.msra.mxu0 0.0
  %1992 = vmatprep.subr.mxu0 0.0
  %1993 = vmatpush2.msra.mxu0 0.0
  %1994 = vmatprep.subr.mxu0 0.0
  %1995 = vmatpush2.msra.mxu0 0.0
  %1996 = vmatprep.subr.mxu0 0.0
  %1997 = vmatpush2.msra.mxu0 0.0
  %1998 = vmatprep.mubr.f32.mxu0 0.0
  %1999 = vmatmul.mubr.f32.gmra.mxu0 %v1932
  %v2000 = vpop.f32.mrf.mxu0
  %v2001 = vadd.f32 0.0, %v2000
  %v2002 = vpop.f32.mrf.mxu0
  %2003 = vdwg.mxu0
  %v2005 = vsel %vm1565, %v1491, 0
  %2007 = vmatprep.subr.mxu0 0.0
  %2008 = vmatpush1.msra.mxu0 0.0
  %2009 = vmatprep.subr.mxu0 0.0
  %2010 = vmatpush1.msra.mxu0 0.0
  %2011 = vmatprep.subr.mxu0 0.0
  %2012 = vmatpush1.msra.mxu0 0.0
  %2013 = vmatprep.subr.mxu0 0.0
  %2014 = vmatpush1.msra.mxu0 0.0
  %2015 = vmatprep.subr.mxu0 0.0
  %2016 = vmatpush1.msra.mxu0 0.0
  %2017 = vmatprep.subr.mxu0 0.0
  %2018 = vmatpush1.msra.mxu0 0.0
  %2019 = vmatprep.subr.mxu0 0.0
  %2020 = vmatpush1.msra.mxu0 0.0
  %2021 = vmatprep.subr.mxu0 0.0
  %2022 = vmatpush1.msra.mxu0 0.0
  %2023 = vmatprep.subr.mxu0 0.0
  %2024 = vmatpush1.msra.mxu0 0.0
  %2025 = vmatprep.subr.mxu0 0.0
  %2026 = vmatpush1.msra.mxu0 0.0
  %2027 = vmatprep.subr.mxu0 0.0
  %2028 = vmatpush1.msra.mxu0 0.0
  %2029 = vmatprep.subr.mxu0 0.0
  %2030 = vmatpush1.msra.mxu0 0.0
  %2031 = vmatprep.subr.mxu0 0.0
  %2032 = vmatpush1.msra.mxu0 %v1528
  %2033 = vmatprep.subr.mxu0 0.0
  %2034 = vmatpush1.msra.mxu0 %v1527
  %2035 = vmatprep.subr.mxu0 0.0
  %2036 = vmatpush1.msra.mxu0 %v1526
  %2037 = vmatprep.subr.mxu0 0.0
  %2038 = vmatpush1.msra.mxu0 %v1525
  %2039 = vmatprep.subr.mxu0 0.0
  %2040 = vmatpush2.msra.mxu0 0.0
  %2041 = vmatprep.subr.mxu0 0.0
  %2042 = vmatpush2.msra.mxu0 0.0
  %2043 = vmatprep.subr.mxu0 0.0
  %2044 = vmatpush2.msra.mxu0 0.0
  %2045 = vmatprep.subr.mxu0 0.0
  %2046 = vmatpush2.msra.mxu0 0.0
  %2047 = vmatprep.subr.mxu0 0.0
  %2048 = vmatpush2.msra.mxu0 0.0
  %2049 = vmatprep.subr.mxu0 0.0
  %2050 = vmatpush2.msra.mxu0 0.0
  %2051 = vmatprep.subr.mxu0 0.0
  %2052 = vmatpush2.msra.mxu0 0.0
  %2053 = vmatprep.subr.mxu0 0.0
  %2054 = vmatpush2.msra.mxu0 0.0
  %2055 = vmatprep.subr.mxu0 0.0
  %2056 = vmatpush2.msra.mxu0 0.0
  %2057 = vmatprep.subr.mxu0 0.0
  %2058 = vmatpush2.msra.mxu0 0.0
  %2059 = vmatprep.subr.mxu0 0.0
  %2060 = vmatpush2.msra.mxu0 0.0
  %2061 = vmatprep.subr.mxu0 0.0
  %2062 = vmatpush2.msra.mxu0 0.0
  %2063 = vmatprep.subr.mxu0 0.0
  %2064 = vmatpush2.msra.mxu0 0.0
  %2065 = vmatprep.subr.mxu0 0.0
  %2066 = vmatpush2.msra.mxu0 0.0
  %2067 = vmatprep.subr.mxu0 0.0
  %2068 = vmatpush2.msra.mxu0 0.0
  %2069 = vmatprep.subr.mxu0 0.0
  %2070 = vmatpush2.msra.mxu0 0.0
  %2071 = vmatprep.mubr.f32.mxu0 0.0
  %2072 = vmatmul.mubr.f32.gmra.mxu0 %v2005
  %v2073 = vpop.f32.mrf.mxu0
  %v2074 = vadd.f32 0.0, %v2073
  %v2075 = vpop.f32.mrf.mxu0
  %2076 = vdwg.mxu0
  %v2078 = vsel %vm1565, %v1492, 0
  %2080 = vmatprep.subr.mxu0 0.0
  %2081 = vmatpush1.msra.mxu0 0.0
  %2082 = vmatprep.subr.mxu0 0.0
  %2083 = vmatpush1.msra.mxu0 0.0
  %2084 = vmatprep.subr.mxu0 0.0
  %2085 = vmatpush1.msra.mxu0 0.0
  %2086 = vmatprep.subr.mxu0 0.0
  %2087 = vmatpush1.msra.mxu0 0.0
  %2088 = vmatprep.subr.mxu0 0.0
  %2089 = vmatpush1.msra.mxu0 0.0
  %2090 = vmatprep.subr.mxu0 0.0
  %2091 = vmatpush1.msra.mxu0 0.0
  %2092 = vmatprep.subr.mxu0 0.0
  %2093 = vmatpush1.msra.mxu0 0.0
  %2094 = vmatprep.subr.mxu0 0.0
  %2095 = vmatpush1.msra.mxu0 0.0
  %2096 = vmatprep.subr.mxu0 0.0
  %2097 = vmatpush1.msra.mxu0 0.0
  %2098 = vmatprep.subr.mxu0 0.0
  %2099 = vmatpush1.msra.mxu0 0.0
  %2100 = vmatprep.subr.mxu0 0.0
  %2101 = vmatpush1.msra.mxu0 0.0
  %2102 = vmatprep.subr.mxu0 0.0
  %2103 = vmatpush1.msra.mxu0 0.0
  %2104 = vmatprep.subr.mxu0 0.0
  %2105 = vmatpush1.msra.mxu0 %v1532
  %2106 = vmatprep.subr.mxu0 0.0
  %2107 = vmatpush1.msra.mxu0 %v1531
  %2108 = vmatprep.subr.mxu0 0.0
  %2109 = vmatpush1.msra.mxu0 %v1530
  %2110 = vmatprep.subr.mxu0 0.0
  %2111 = vmatpush1.msra.mxu0 %v1529
  %2112 = vmatprep.subr.mxu0 0.0
  %2113 = vmatpush2.msra.mxu0 0.0
  %2114 = vmatprep.subr.mxu0 0.0
  %2115 = vmatpush2.msra.mxu0 0.0
  %2116 = vmatprep.subr.mxu0 0.0
  %2117 = vmatpush2.msra.mxu0 0.0
  %2118 = vmatprep.subr.mxu0 0.0
  %2119 = vmatpush2.msra.mxu0 0.0
  %2120 = vmatprep.subr.mxu0 0.0
  %2121 = vmatpush2.msra.mxu0 0.0
  %2122 = vmatprep.subr.mxu0 0.0
  %2123 = vmatpush2.msra.mxu0 0.0
  %2124 = vmatprep.subr.mxu0 0.0
  %2125 = vmatpush2.msra.mxu0 0.0
  %2126 = vmatprep.subr.mxu0 0.0
  %2127 = vmatpush2.msra.mxu0 0.0
  %2128 = vmatprep.subr.mxu0 0.0
  %2129 = vmatpush2.msra.mxu0 0.0
  %2130 = vmatprep.subr.mxu0 0.0
  %2131 = vmatpush2.msra.mxu0 0.0
  %2132 = vmatprep.subr.mxu0 0.0
  %2133 = vmatpush2.msra.mxu0 0.0
  %2134 = vmatprep.subr.mxu0 0.0
  %2135 = vmatpush2.msra.mxu0 0.0
  %2136 = vmatprep.subr.mxu0 0.0
  %2137 = vmatpush2.msra.mxu0 0.0
  %2138 = vmatprep.subr.mxu0 0.0
  %2139 = vmatpush2.msra.mxu0 0.0
  %2140 = vmatprep.subr.mxu0 0.0
  %2141 = vmatpush2.msra.mxu0 0.0
  %2142 = vmatprep.subr.mxu0 0.0
  %2143 = vmatpush2.msra.mxu0 0.0
  %2144 = vmatprep.mubr.f32.mxu0 0.0
  %2145 = vmatmul.mubr.f32.gmra.mxu0 %v2078
  %v2146 = vpop.f32.mrf.mxu0
  %v2147 = vadd.f32 0.0, %v2146
  %v2148 = vpop.f32.mrf.mxu0
  %2149 = vdwg.mxu0
  %v2151 = vsel %vm1565, %v1493, 0
  %2153 = vmatprep.subr.mxu0 0.0
  %2154 = vmatpush1.msra.mxu0 0.0
  %2155 = vmatprep.subr.mxu0 0.0
  %2156 = vmatpush1.msra.mxu0 0.0
  %2157 = vmatprep.subr.mxu0 0.0
  %2158 = vmatpush1.msra.mxu0 0.0
  %2159 = vmatprep.subr.mxu0 0.0
  %2160 = vmatpush1.msra.mxu0 0.0
  %2161 = vmatprep.subr.mxu0 0.0
  %2162 = vmatpush1.msra.mxu0 0.0
  %2163 = vmatprep.subr.mxu0 0.0
  %2164 = vmatpush1.msra.mxu0 0.0
  %2165 = vmatprep.subr.mxu0 0.0
  %2166 = vmatpush1.msra.mxu0 0.0
  %2167 = vmatprep.subr.mxu0 0.0
  %2168 = vmatpush1.msra.mxu0 0.0
  %2169 = vmatprep.subr.mxu0 0.0
  %2170 = vmatpush1.msra.mxu0 0.0
  %2171 = vmatprep.subr.mxu0 0.0
  %2172 = vmatpush1.msra.mxu0 0.0
  %2173 = vmatprep.subr.mxu0 0.0
  %2174 = vmatpush1.msra.mxu0 0.0
  %2175 = vmatprep.subr.mxu0 0.0
  %2176 = vmatpush1.msra.mxu0 0.0
  %2177 = vmatprep.subr.mxu0 0.0
  %2178 = vmatpush1.msra.mxu0 %v1536
  %2179 = vmatprep.subr.mxu0 0.0
  %2180 = vmatpush1.msra.mxu0 %v1535
  %2181 = vmatprep.subr.mxu0 0.0
  %2182 = vmatpush1.msra.mxu0 %v1534
  %2183 = vmatprep.subr.mxu0 0.0
  %2184 = vmatpush1.msra.mxu0 %v1533
  %2185 = vmatprep.subr.mxu0 0.0
  %2186 = vmatpush2.msra.mxu0 0.0
  %2187 = vmatprep.subr.mxu0 0.0
  %2188 = vmatpush2.msra.mxu0 0.0
  %2189 = vmatprep.subr.mxu0 0.0
  %2190 = vmatpush2.msra.mxu0 0.0
  %2191 = vmatprep.subr.mxu0 0.0
  %2192 = vmatpush2.msra.mxu0 0.0
  %2193 = vmatprep.subr.mxu0 0.0
  %2194 = vmatpush2.msra.mxu0 0.0
  %2195 = vmatprep.subr.mxu0 0.0
  %2196 = vmatpush2.msra.mxu0 0.0
  %2197 = vmatprep.subr.mxu0 0.0
  %2198 = vmatpush2.msra.mxu0 0.0
  %2199 = vmatprep.subr.mxu0 0.0
  %2200 = vmatpush2.msra.mxu0 0.0
  %2201 = vmatprep.subr.mxu0 0.0
  %2202 = vmatpush2.msra.mxu0 0.0
  %2203 = vmatprep.subr.mxu0 0.0
  %2204 = vmatpush2.msra.mxu0 0.0
  %2205 = vmatprep.subr.mxu0 0.0
  %2206 = vmatpush2.msra.mxu0 0.0
  %2207 = vmatprep.subr.mxu0 0.0
  %2208 = vmatpush2.msra.mxu0 0.0
  %2209 = vmatprep.subr.mxu0 0.0
  %2210 = vmatpush2.msra.mxu0 0.0
  %2211 = vmatprep.subr.mxu0 0.0
  %2212 = vmatpush2.msra.mxu0 0.0
  %2213 = vmatprep.subr.mxu0 0.0
  %2214 = vmatpush2.msra.mxu0 0.0
  %2215 = vmatprep.subr.mxu0 0.0
  %2216 = vmatpush2.msra.mxu0 0.0
  %2217 = vmatprep.mubr.f32.mxu0 0.0
  %2218 = vmatmul.mubr.f32.gmra.mxu0 %v2151
  %v2219 = vpop.f32.mrf.mxu0
  %v2220 = vadd.f32 0.0, %v2219
  %v2221 = vpop.f32.mrf.mxu0
  %2222 = vdwg.mxu0
  %v2224 = vsel %vm1565, %v1494, 0
  %2226 = vmatprep.subr.mxu0 0.0
  %2227 = vmatpush1.msra.mxu0 0.0
  %2228 = vmatprep.subr.mxu0 0.0
  %2229 = vmatpush1.msra.mxu0 0.0
  %2230 = vmatprep.subr.mxu0 0.0
  %2231 = vmatpush1.msra.mxu0 0.0
  %2232 = vmatprep.subr.mxu0 0.0
  %2233 = vmatpush1.msra.mxu0 0.0
  %2234 = vmatprep.subr.mxu0 0.0
  %2235 = vmatpush1.msra.mxu0 0.0
  %2236 = vmatprep.subr.mxu0 0.0
  %2237 = vmatpush1.msra.mxu0 0.0
  %2238 = vmatprep.subr.mxu0 0.0
  %2239 = vmatpush1.msra.mxu0 0.0
  %2240 = vmatprep.subr.mxu0 0.0
  %2241 = vmatpush1.msra.mxu0 0.0
  %2242 = vmatprep.subr.mxu0 0.0
  %2243 = vmatpush1.msra.mxu0 0.0
  %2244 = vmatprep.subr.mxu0 0.0
  %2245 = vmatpush1.msra.mxu0 0.0
  %2246 = vmatprep.subr.mxu0 0.0
  %2247 = vmatpush1.msra.mxu0 0.0
  %2248 = vmatprep.subr.mxu0 0.0
  %2249 = vmatpush1.msra.mxu0 0.0
  %2250 = vmatprep.subr.mxu0 0.0
  %2251 = vmatpush1.msra.mxu0 %v1540
  %2252 = vmatprep.subr.mxu0 0.0
  %2253 = vmatpush1.msra.mxu0 %v1539
  %2254 = vmatprep.subr.mxu0 0.0
  %2255 = vmatpush1.msra.mxu0 %v1538
  %2256 = vmatprep.subr.mxu0 0.0
  %2257 = vmatpush1.msra.mxu0 %v1537
  %2258 = vmatprep.subr.mxu0 0.0
  %2259 = vmatpush2.msra.mxu0 0.0
  %2260 = vmatprep.subr.mxu0 0.0
  %2261 = vmatpush2.msra.mxu0 0.0
  %2262 = vmatprep.subr.mxu0 0.0
  %2263 = vmatpush2.msra.mxu0 0.0
  %2264 = vmatprep.subr.mxu0 0.0
  %2265 = vmatpush2.msra.mxu0 0.0
  %2266 = vmatprep.subr.mxu0 0.0
  %2267 = vmatpush2.msra.mxu0 0.0
  %2268 = vmatprep.subr.mxu0 0.0
  %2269 = vmatpush2.msra.mxu0 0.0
  %2270 = vmatprep.subr.mxu0 0.0
  %2271 = vmatpush2.msra.mxu0 0.0
  %2272 = vmatprep.subr.mxu0 0.0
  %2273 = vmatpush2.msra.mxu0 0.0
  %2274 = vmatprep.subr.mxu0 0.0
  %2275 = vmatpush2.msra.mxu0 0.0
  %2276 = vmatprep.subr.mxu0 0.0
  %2277 = vmatpush2.msra.mxu0 0.0
  %2278 = vmatprep.subr.mxu0 0.0
  %2279 = vmatpush2.msra.mxu0 0.0
  %2280 = vmatprep.subr.mxu0 0.0
  %2281 = vmatpush2.msra.mxu0 0.0
  %2282 = vmatprep.subr.mxu0 0.0
  %2283 = vmatpush2.msra.mxu0 0.0
  %2284 = vmatprep.subr.mxu0 0.0
  %2285 = vmatpush2.msra.mxu0 0.0
  %2286 = vmatprep.subr.mxu0 0.0
  %2287 = vmatpush2.msra.mxu0 0.0
  %2288 = vmatprep.subr.mxu0 0.0
  %2289 = vmatpush2.msra.mxu0 0.0
  %2290 = vmatprep.mubr.f32.mxu0 0.0
  %2291 = vmatmul.mubr.f32.gmra.mxu0 %v2224
  %v2292 = vpop.f32.mrf.mxu0
  %v2293 = vadd.f32 0.0, %v2292
  %v2294 = vpop.f32.mrf.mxu0
  %2295 = vdwg.mxu0
  %v2297 = vsel %vm1565, %v1495, 0
  %2299 = vmatprep.subr.mxu0 0.0
  %2300 = vmatpush1.msra.mxu0 0.0
  %2301 = vmatprep.subr.mxu0 0.0
  %2302 = vmatpush1.msra.mxu0 0.0
  %2303 = vmatprep.subr.mxu0 0.0
  %2304 = vmatpush1.msra.mxu0 0.0
  %2305 = vmatprep.subr.mxu0 0.0
  %2306 = vmatpush1.msra.mxu0 0.0
  %2307 = vmatprep.subr.mxu0 0.0
  %2308 = vmatpush1.msra.mxu0 0.0
  %2309 = vmatprep.subr.mxu0 0.0
  %2310 = vmatpush1.msra.mxu0 0.0
  %2311 = vmatprep.subr.mxu0 0.0
  %2312 = vmatpush1.msra.mxu0 0.0
  %2313 = vmatprep.subr.mxu0 0.0
  %2314 = vmatpush1.msra.mxu0 0.0
  %2315 = vmatprep.subr.mxu0 0.0
  %2316 = vmatpush1.msra.mxu0 0.0
  %2317 = vmatprep.subr.mxu0 0.0
  %2318 = vmatpush1.msra.mxu0 0.0
  %2319 = vmatprep.subr.mxu0 0.0
  %2320 = vmatpush1.msra.mxu0 0.0
  %2321 = vmatprep.subr.mxu0 0.0
  %2322 = vmatpush1.msra.mxu0 0.0
  %2323 = vmatprep.subr.mxu0 0.0
  %2324 = vmatpush1.msra.mxu0 %v1544
  %2325 = vmatprep.subr.mxu0 0.0
  %2326 = vmatpush1.msra.mxu0 %v1543
  %2327 = vmatprep.subr.mxu0 0.0
  %2328 = vmatpush1.msra.mxu0 %v1542
  %2329 = vmatprep.subr.mxu0 0.0
  %2330 = vmatpush1.msra.mxu0 %v1541
  %2331 = vmatprep.subr.mxu0 0.0
  %2332 = vmatpush2.msra.mxu0 0.0
  %2333 = vmatprep.subr.mxu0 0.0
  %2334 = vmatpush2.msra.mxu0 0.0
  %2335 = vmatprep.subr.mxu0 0.0
  %2336 = vmatpush2.msra.mxu0 0.0
  %2337 = vmatprep.subr.mxu0 0.0
  %2338 = vmatpush2.msra.mxu0 0.0
  %2339 = vmatprep.subr.mxu0 0.0
  %2340 = vmatpush2.msra.mxu0 0.0
  %2341 = vmatprep.subr.mxu0 0.0
  %2342 = vmatpush2.msra.mxu0 0.0
  %2343 = vmatprep.subr.mxu0 0.0
  %2344 = vmatpush2.msra.mxu0 0.0
  %2345 = vmatprep.subr.mxu0 0.0
  %2346 = vmatpush2.msra.mxu0 0.0
  %2347 = vmatprep.subr.mxu0 0.0
  %2348 = vmatpush2.msra.mxu0 0.0
  %2349 = vmatprep.subr.mxu0 0.0
  %2350 = vmatpush2.msra.mxu0 0.0
  %2351 = vmatprep.subr.mxu0 0.0
  %2352 = vmatpush2.msra.mxu0 0.0
  %2353 = vmatprep.subr.mxu0 0.0
  %2354 = vmatpush2.msra.mxu0 0.0
  %2355 = vmatprep.subr.mxu0 0.0
  %2356 = vmatpush2.msra.mxu0 0.0
  %2357 = vmatprep.subr.mxu0 0.0
  %2358 = vmatpush2.msra.mxu0 0.0
  %2359 = vmatprep.subr.mxu0 0.0
  %2360 = vmatpush2.msra.mxu0 0.0
  %2361 = vmatprep.subr.mxu0 0.0
  %2362 = vmatpush2.msra.mxu0 0.0
  %2363 = vmatprep.mubr.f32.mxu0 0.0
  %2364 = vmatmul.mubr.f32.gmra.mxu0 %v2297
  %v2365 = vpop.f32.mrf.mxu0
  %v2366 = vadd.f32 0.0, %v2365
  %v2367 = vpop.f32.mrf.mxu0
  %2368 = vdwg.mxu0
  %v2370 = vsel %vm1565, %v1496, 0
  %2372 = vmatprep.subr.mxu0 0.0
  %2373 = vmatpush1.msra.mxu0 0.0
  %2374 = vmatprep.subr.mxu0 0.0
  %2375 = vmatpush1.msra.mxu0 0.0
  %2376 = vmatprep.subr.mxu0 0.0
  %2377 = vmatpush1.msra.mxu0 0.0
  %2378 = vmatprep.subr.mxu0 0.0
  %2379 = vmatpush1.msra.mxu0 0.0
  %2380 = vmatprep.subr.mxu0 0.0
  %2381 = vmatpush1.msra.mxu0 0.0
  %2382 = vmatprep.subr.mxu0 0.0
  %2383 = vmatpush1.msra.mxu0 0.0
  %2384 = vmatprep.subr.mxu0 0.0
  %2385 = vmatpush1.msra.mxu0 0.0
  %2386 = vmatprep.subr.mxu0 0.0
  %2387 = vmatpush1.msra.mxu0 0.0
  %2388 = vmatprep.subr.mxu0 0.0
  %2389 = vmatpush1.msra.mxu0 0.0
  %2390 = vmatprep.subr.mxu0 0.0
  %2391 = vmatpush1.msra.mxu0 0.0
  %2392 = vmatprep.subr.mxu0 0.0
  %2393 = vmatpush1.msra.mxu0 0.0
  %2394 = vmatprep.subr.mxu0 0.0
  %2395 = vmatpush1.msra.mxu0 0.0
  %2396 = vmatprep.subr.mxu0 0.0
  %2397 = vmatpush1.msra.mxu0 %v1548
  %2398 = vmatprep.subr.mxu0 0.0
  %2399 = vmatpush1.msra.mxu0 %v1547
  %2400 = vmatprep.subr.mxu0 0.0
  %2401 = vmatpush1.msra.mxu0 %v1546
  %2402 = vmatprep.subr.mxu0 0.0
  %2403 = vmatpush1.msra.mxu0 %v1545
  %2404 = vmatprep.subr.mxu0 0.0
  %2405 = vmatpush2.msra.mxu0 0.0
  %2406 = vmatprep.subr.mxu0 0.0
  %2407 = vmatpush2.msra.mxu0 0.0
  %2408 = vmatprep.subr.mxu0 0.0
  %2409 = vmatpush2.msra.mxu0 0.0
  %2410 = vmatprep.subr.mxu0 0.0
  %2411 = vmatpush2.msra.mxu0 0.0
  %2412 = vmatprep.subr.mxu0 0.0
  %2413 = vmatpush2.msra.mxu0 0.0
  %2414 = vmatprep.subr.mxu0 0.0
  %2415 = vmatpush2.msra.mxu0 0.0
  %2416 = vmatprep.subr.mxu0 0.0
  %2417 = vmatpush2.msra.mxu0 0.0
  %2418 = vmatprep.subr.mxu0 0.0
  %2419 = vmatpush2.msra.mxu0 0.0
  %2420 = vmatprep.subr.mxu0 0.0
  %2421 = vmatpush2.msra.mxu0 0.0
  %2422 = vmatprep.subr.mxu0 0.0
  %2423 = vmatpush2.msra.mxu0 0.0
  %2424 = vmatprep.subr.mxu0 0.0
  %2425 = vmatpush2.msra.mxu0 0.0
  %2426 = vmatprep.subr.mxu0 0.0
  %2427 = vmatpush2.msra.mxu0 0.0
  %2428 = vmatprep.subr.mxu0 0.0
  %2429 = vmatpush2.msra.mxu0 0.0
  %2430 = vmatprep.subr.mxu0 0.0
  %2431 = vmatpush2.msra.mxu0 0.0
  %2432 = vmatprep.subr.mxu0 0.0
  %2433 = vmatpush2.msra.mxu0 0.0
  %2434 = vmatprep.subr.mxu0 0.0
  %2435 = vmatpush2.msra.mxu0 0.0
  %2436 = vmatprep.mubr.f32.mxu0 0.0
  %2437 = vmatmul.mubr.f32.gmra.mxu0 %v2370
  %v2438 = vpop.f32.mrf.mxu0
  %v2439 = vadd.f32 0.0, %v2438
  %v2440 = vpop.f32.mrf.mxu0
  %2441 = vdwg.mxu0
  %v2443 = vsel %vm1565, %v1497, 0
  %2445 = vmatprep.subr.mxu0 0.0
  %2446 = vmatpush1.msra.mxu0 0.0
  %2447 = vmatprep.subr.mxu0 0.0
  %2448 = vmatpush1.msra.mxu0 0.0
  %2449 = vmatprep.subr.mxu0 0.0
  %2450 = vmatpush1.msra.mxu0 0.0
  %2451 = vmatprep.subr.mxu0 0.0
  %2452 = vmatpush1.msra.mxu0 0.0
  %2453 = vmatprep.subr.mxu0 0.0
  %2454 = vmatpush1.msra.mxu0 0.0
  %2455 = vmatprep.subr.mxu0 0.0
  %2456 = vmatpush1.msra.mxu0 0.0
  %2457 = vmatprep.subr.mxu0 0.0
  %2458 = vmatpush1.msra.mxu0 0.0
  %2459 = vmatprep.subr.mxu0 0.0
  %2460 = vmatpush1.msra.mxu0 0.0
  %2461 = vmatprep.subr.mxu0 0.0
  %2462 = vmatpush1.msra.mxu0 0.0
  %2463 = vmatprep.subr.mxu0 0.0
  %2464 = vmatpush1.msra.mxu0 0.0
  %2465 = vmatprep.subr.mxu0 0.0
  %2466 = vmatpush1.msra.mxu0 0.0
  %2467 = vmatprep.subr.mxu0 0.0
  %2468 = vmatpush1.msra.mxu0 0.0
  %2469 = vmatprep.subr.mxu0 0.0
  %2470 = vmatpush1.msra.mxu0 %v1552
  %2471 = vmatprep.subr.mxu0 0.0
  %2472 = vmatpush1.msra.mxu0 %v1551
  %2473 = vmatprep.subr.mxu0 0.0
  %2474 = vmatpush1.msra.mxu0 %v1550
  %2475 = vmatprep.subr.mxu0 0.0
  %2476 = vmatpush1.msra.mxu0 %v1549
  %2477 = vmatprep.subr.mxu0 0.0
  %2478 = vmatpush2.msra.mxu0 0.0
  %2479 = vmatprep.subr.mxu0 0.0
  %2480 = vmatpush2.msra.mxu0 0.0
  %2481 = vmatprep.subr.mxu0 0.0
  %2482 = vmatpush2.msra.mxu0 0.0
  %2483 = vmatprep.subr.mxu0 0.0
  %2484 = vmatpush2.msra.mxu0 0.0
  %2485 = vmatprep.subr.mxu0 0.0
  %2486 = vmatpush2.msra.mxu0 0.0
  %2487 = vmatprep.subr.mxu0 0.0
  %2488 = vmatpush2.msra.mxu0 0.0
  %2489 = vmatprep.subr.mxu0 0.0
  %2490 = vmatpush2.msra.mxu0 0.0
  %2491 = vmatprep.subr.mxu0 0.0
  %2492 = vmatpush2.msra.mxu0 0.0
  %2493 = vmatprep.subr.mxu0 0.0
  %2494 = vmatpush2.msra.mxu0 0.0
  %2495 = vmatprep.subr.mxu0 0.0
  %2496 = vmatpush2.msra.mxu0 0.0
  %2497 = vmatprep.subr.mxu0 0.0
  %2498 = vmatpush2.msra.mxu0 0.0
  %2499 = vmatprep.subr.mxu0 0.0
  %2500 = vmatpush2.msra.mxu0 0.0
  %2501 = vmatprep.subr.mxu0 0.0
  %2502 = vmatpush2.msra.mxu0 0.0
  %2503 = vmatprep.subr.mxu0 0.0
  %2504 = vmatpush2.msra.mxu0 0.0
  %2505 = vmatprep.subr.mxu0 0.0
  %2506 = vmatpush2.msra.mxu0 0.0
  %2507 = vmatprep.subr.mxu0 0.0
  %2508 = vmatpush2.msra.mxu0 0.0
  %2509 = vmatprep.mubr.f32.mxu0 0.0
  %2510 = vmatmul.mubr.f32.gmra.mxu0 %v2443
  %v2511 = vpop.f32.mrf.mxu0
  %v2512 = vadd.f32 0.0, %v2511
  %v2513 = vpop.f32.mrf.mxu0
  %2514 = vdwg.mxu0
  %v2516 = vsel %vm1565, %v1498, 0
  %2518 = vmatprep.subr.mxu0 0.0
  %2519 = vmatpush1.msra.mxu0 0.0
  %2520 = vmatprep.subr.mxu0 0.0
  %2521 = vmatpush1.msra.mxu0 0.0
  %2522 = vmatprep.subr.mxu0 0.0
  %2523 = vmatpush1.msra.mxu0 0.0
  %2524 = vmatprep.subr.mxu0 0.0
  %2525 = vmatpush1.msra.mxu0 0.0
  %2526 = vmatprep.subr.mxu0 0.0
  %2527 = vmatpush1.msra.mxu0 0.0
  %2528 = vmatprep.subr.mxu0 0.0
  %2529 = vmatpush1.msra.mxu0 0.0
  %2530 = vmatprep.subr.mxu0 0.0
  %2531 = vmatpush1.msra.mxu0 0.0
  %2532 = vmatprep.subr.mxu0 0.0
  %2533 = vmatpush1.msra.mxu0 0.0
  %2534 = vmatprep.subr.mxu0 0.0
  %2535 = vmatpush1.msra.mxu0 0.0
  %2536 = vmatprep.subr.mxu0 0.0
  %2537 = vmatpush1.msra.mxu0 0.0
  %2538 = vmatprep.subr.mxu0 0.0
  %2539 = vmatpush1.msra.mxu0 0.0
  %2540 = vmatprep.subr.mxu0 0.0
  %2541 = vmatpush1.msra.mxu0 0.0
  %2542 = vmatprep.subr.mxu0 0.0
  %2543 = vmatpush1.msra.mxu0 %v1556
  %2544 = vmatprep.subr.mxu0 0.0
  %2545 = vmatpush1.msra.mxu0 %v1555
  %2546 = vmatprep.subr.mxu0 0.0
  %2547 = vmatpush1.msra.mxu0 %v1554
  %2548 = vmatprep.subr.mxu0 0.0
  %2549 = vmatpush1.msra.mxu0 %v1553
  %2550 = vmatprep.subr.mxu0 0.0
  %2551 = vmatpush2.msra.mxu0 0.0
  %2552 = vmatprep.subr.mxu0 0.0
  %2553 = vmatpush2.msra.mxu0 0.0
  %2554 = vmatprep.subr.mxu0 0.0
  %2555 = vmatpush2.msra.mxu0 0.0
  %2556 = vmatprep.subr.mxu0 0.0
  %2557 = vmatpush2.msra.mxu0 0.0
  %2558 = vmatprep.subr.mxu0 0.0
  %2559 = vmatpush2.msra.mxu0 0.0
  %2560 = vmatprep.subr.mxu0 0.0
  %2561 = vmatpush2.msra.mxu0 0.0
  %2562 = vmatprep.subr.mxu0 0.0
  %2563 = vmatpush2.msra.mxu0 0.0
  %2564 = vmatprep.subr.mxu0 0.0
  %2565 = vmatpush2.msra.mxu0 0.0
  %2566 = vmatprep.subr.mxu0 0.0
  %2567 = vmatpush2.msra.mxu0 0.0
  %2568 = vmatprep.subr.mxu0 0.0
  %2569 = vmatpush2.msra.mxu0 0.0
  %2570 = vmatprep.subr.mxu0 0.0
  %2571 = vmatpush2.msra.mxu0 0.0
  %2572 = vmatprep.subr.mxu0 0.0
  %2573 = vmatpush2.msra.mxu0 0.0
  %2574 = vmatprep.subr.mxu0 0.0
  %2575 = vmatpush2.msra.mxu0 0.0
  %2576 = vmatprep.subr.mxu0 0.0
  %2577 = vmatpush2.msra.mxu0 0.0
  %2578 = vmatprep.subr.mxu0 0.0
  %2579 = vmatpush2.msra.mxu0 0.0
  %2580 = vmatprep.subr.mxu0 0.0
  %2581 = vmatpush2.msra.mxu0 0.0
  %2582 = vmatprep.mubr.f32.mxu0 0.0
  %2583 = vmatmul.mubr.f32.gmra.mxu0 %v2516
  %v2584 = vpop.f32.mrf.mxu0
  %v2585 = vadd.f32 0.0, %v2584
  %v2586 = vpop.f32.mrf.mxu0
  %2587 = vdwg.mxu0
  %v2589 = vsel %vm1565, %v1499, 0
  %2591 = vmatprep.subr.mxu0 0.0
  %2592 = vmatpush1.msra.mxu0 0.0
  %2593 = vmatprep.subr.mxu0 0.0
  %2594 = vmatpush1.msra.mxu0 0.0
  %2595 = vmatprep.subr.mxu0 0.0
  %2596 = vmatpush1.msra.mxu0 0.0
  %2597 = vmatprep.subr.mxu0 0.0
  %2598 = vmatpush1.msra.mxu0 0.0
  %2599 = vmatprep.subr.mxu0 0.0
  %2600 = vmatpush1.msra.mxu0 0.0
  %2601 = vmatprep.subr.mxu0 0.0
  %2602 = vmatpush1.msra.mxu0 0.0
  %2603 = vmatprep.subr.mxu0 0.0
  %2604 = vmatpush1.msra.mxu0 0.0
  %2605 = vmatprep.subr.mxu0 0.0
  %2606 = vmatpush1.msra.mxu0 0.0
  %2607 = vmatprep.subr.mxu0 0.0
  %2608 = vmatpush1.msra.mxu0 0.0
  %2609 = vmatprep.subr.mxu0 0.0
  %2610 = vmatpush1.msra.mxu0 0.0
  %2611 = vmatprep.subr.mxu0 0.0
  %2612 = vmatpush1.msra.mxu0 0.0
  %2613 = vmatprep.subr.mxu0 0.0
  %2614 = vmatpush1.msra.mxu0 0.0
  %2615 = vmatprep.subr.mxu0 0.0
  %2616 = vmatpush1.msra.mxu0 %v1560
  %2617 = vmatprep.subr.mxu0 0.0
  %2618 = vmatpush1.msra.mxu0 %v1559
  %2619 = vmatprep.subr.mxu0 0.0
  %2620 = vmatpush1.msra.mxu0 %v1558
  %2621 = vmatprep.subr.mxu0 0.0
  %2622 = vmatpush1.msra.mxu0 %v1557
  %2623 = vmatprep.subr.mxu0 0.0
  %2624 = vmatpush2.msra.mxu0 0.0
  %2625 = vmatprep.subr.mxu0 0.0
  %2626 = vmatpush2.msra.mxu0 0.0
  %2627 = vmatprep.subr.mxu0 0.0
  %2628 = vmatpush2.msra.mxu0 0.0
  %2629 = vmatprep.subr.mxu0 0.0
  %2630 = vmatpush2.msra.mxu0 0.0
  %2631 = vmatprep.subr.mxu0 0.0
  %2632 = vmatpush2.msra.mxu0 0.0
  %2633 = vmatprep.subr.mxu0 0.0
  %2634 = vmatpush2.msra.mxu0 0.0
  %2635 = vmatprep.subr.mxu0 0.0
  %2636 = vmatpush2.msra.mxu0 0.0
  %2637 = vmatprep.subr.mxu0 0.0
  %2638 = vmatpush2.msra.mxu0 0.0
  %2639 = vmatprep.subr.mxu0 0.0
  %2640 = vmatpush2.msra.mxu0 0.0
  %2641 = vmatprep.subr.mxu0 0.0
  %2642 = vmatpush2.msra.mxu0 0.0
  %2643 = vmatprep.subr.mxu0 0.0
  %2644 = vmatpush2.msra.mxu0 0.0
  %2645 = vmatprep.subr.mxu0 0.0
  %2646 = vmatpush2.msra.mxu0 0.0
  %2647 = vmatprep.subr.mxu0 0.0
  %2648 = vmatpush2.msra.mxu0 0.0
  %2649 = vmatprep.subr.mxu0 0.0
  %2650 = vmatpush2.msra.mxu0 0.0
  %2651 = vmatprep.subr.mxu0 0.0
  %2652 = vmatpush2.msra.mxu0 0.0
  %2653 = vmatprep.subr.mxu0 0.0
  %2654 = vmatpush2.msra.mxu0 0.0
  %2655 = vmatprep.mubr.f32.mxu0 0.0
  %2656 = vmatmul.mubr.f32.gmra.mxu0 %v2589
  %v2657 = vpop.f32.mrf.mxu0
  %v2658 = vadd.f32 0.0, %v2657
  %v2659 = vpop.f32.mrf.mxu0
  %2660 = vdwg.mxu0
  %v2662 = vsel %vm1565, %v1500, 0
  %2664 = vmatprep.subr.mxu0 0.0
  %2665 = vmatpush1.msra.mxu0 0.0
  %2666 = vmatprep.subr.mxu0 0.0
  %2667 = vmatpush1.msra.mxu0 0.0
  %2668 = vmatprep.subr.mxu0 0.0
  %2669 = vmatpush1.msra.mxu0 0.0
  %2670 = vmatprep.subr.mxu0 0.0
  %2671 = vmatpush1.msra.mxu0 0.0
  %2672 = vmatprep.subr.mxu0 0.0
  %2673 = vmatpush1.msra.mxu0 0.0
  %2674 = vmatprep.subr.mxu0 0.0
  %2675 = vmatpush1.msra.mxu0 0.0
  %2676 = vmatprep.subr.mxu0 0.0
  %2677 = vmatpush1.msra.mxu0 0.0
  %2678 = vmatprep.subr.mxu0 0.0
  %2679 = vmatpush1.msra.mxu0 0.0
  %2680 = vmatprep.subr.mxu0 0.0
  %2681 = vmatpush1.msra.mxu0 0.0
  %2682 = vmatprep.subr.mxu0 0.0
  %2683 = vmatpush1.msra.mxu0 0.0
  %2684 = vmatprep.subr.mxu0 0.0
  %2685 = vmatpush1.msra.mxu0 0.0
  %2686 = vmatprep.subr.mxu0 0.0
  %2687 = vmatpush1.msra.mxu0 0.0
  %2688 = vmatprep.subr.mxu0 0.0
  %2689 = vmatpush1.msra.mxu0 %v1564
  %2690 = vmatprep.subr.mxu0 0.0
  %2691 = vmatpush1.msra.mxu0 %v1563
  %2692 = vmatprep.subr.mxu0 0.0
  %2693 = vmatpush1.msra.mxu0 %v1562
  %2694 = vmatprep.subr.mxu0 0.0
  %2695 = vmatpush1.msra.mxu0 %v1561
  %2696 = vmatprep.subr.mxu0 0.0
  %2697 = vmatpush2.msra.mxu0 0.0
  %2698 = vmatprep.subr.mxu0 0.0
  %2699 = vmatpush2.msra.mxu0 0.0
  %2700 = vmatprep.subr.mxu0 0.0
  %2701 = vmatpush2.msra.mxu0 0.0
  %2702 = vmatprep.subr.mxu0 0.0
  %2703 = vmatpush2.msra.mxu0 0.0
  %2704 = vmatprep.subr.mxu0 0.0
  %2705 = vmatpush2.msra.mxu0 0.0
  %2706 = vmatprep.subr.mxu0 0.0
  %2707 = vmatpush2.msra.mxu0 0.0
  %2708 = vmatprep.subr.mxu0 0.0
  %2709 = vmatpush2.msra.mxu0 0.0
  %2710 = vmatprep.subr.mxu0 0.0
  %2711 = vmatpush2.msra.mxu0 0.0
  %2712 = vmatprep.subr.mxu0 0.0
  %2713 = vmatpush2.msra.mxu0 0.0
  %2714 = vmatprep.subr.mxu0 0.0
  %2715 = vmatpush2.msra.mxu0 0.0
  %2716 = vmatprep.subr.mxu0 0.0
  %2717 = vmatpush2.msra.mxu0 0.0
  %2718 = vmatprep.subr.mxu0 0.0
  %2719 = vmatpush2.msra.mxu0 0.0
  %2720 = vmatprep.subr.mxu0 0.0
  %2721 = vmatpush2.msra.mxu0 0.0
  %2722 = vmatprep.subr.mxu0 0.0
  %2723 = vmatpush2.msra.mxu0 0.0
  %2724 = vmatprep.subr.mxu0 0.0
  %2725 = vmatpush2.msra.mxu0 0.0
  %2726 = vmatprep.subr.mxu0 0.0
  %2727 = vmatpush2.msra.mxu0 0.0
  %2728 = vmatprep.mubr.f32.mxu0 0.0
  %2729 = vmatmul.mubr.f32.gmra.mxu0 %v2662
  %v2730 = vpop.f32.mrf.mxu0
  %v2731 = vadd.f32 0.0, %v2730
  %v2732 = vpop.f32.mrf.mxu0
  %2733 = vdwg.mxu0
  %vm2734 = vcmask 523264
  %v2735 = vsel %vm2734, %v1636, 0.0
  %v2736 = vsel %vm2734, %v1709, 0.0
  %v2737 = vadd.f32 %v2735, %v2736
  %v2738 = vsel %vm2734, %v1782, 0.0
  %v2739 = vadd.f32 %v2737, %v2738
  %v2740 = vsel %vm2734, %v1855, 0.0
  %v2741 = vadd.f32 %v2739, %v2740
  %v2742 = vsel %vm2734, %v1928, 0.0
  %v2743 = vadd.f32 %v2741, %v2742
  %v2744 = vsel %vm2734, %v2001, 0.0
  %v2745 = vadd.f32 %v2743, %v2744
  %v2746 = vsel %vm2734, %v2074, 0.0
  %v2747 = vadd.f32 %v2745, %v2746
  %v2748 = vsel %vm2734, %v2147, 0.0
  %v2749 = vadd.f32 %v2747, %v2748
  %v2750 = vsel %vm2734, %v2220, 0.0
  %v2751 = vadd.f32 %v2749, %v2750
  %v2752 = vsel %vm2734, %v2293, 0.0
  %v2753 = vadd.f32 %v2751, %v2752
  %v2754 = vsel %vm2734, %v2366, 0.0
  %v2755 = vadd.f32 %v2753, %v2754
  %v2756 = vsel %vm2734, %v2439, 0.0
  %v2757 = vadd.f32 %v2755, %v2756
  %v2758 = vsel %vm2734, %v2512, 0.0
  %v2759 = vadd.f32 %v2757, %v2758
  %v2760 = vsel %vm2734, %v2585, 0.0
  %v2761 = vadd.f32 %v2759, %v2760
  %v2762 = vsel %vm2734, %v2658, 0.0
  %v2763 = vadd.f32 %v2761, %v2762
  %v2764 = vsel %vm2734, %v2731, 0.0
  %v2765 = vadd.f32 %v2763, %v2764
  %v2766 = vld [vmem:[%s6] sm:$0x1]
  %v2768 = vlaneseq
  %v2769 = vshrl.u32 %v2768, 7
  %v2770 = vsub.s32 0, %v2769
  %v2771 = vrot.slane %v2766, %v2770
  %v2773 = vadd.f32 %v2765, %v2771
  %v2774 = vmax.f32 %v2773, 0.0
  %v2775 = vld [vmem:[%s7] sm:$0xff]
  %v2776 = vld [vmem:[%s7 + $0x8] sm:$0xff]
  %v2777 = vld [vmem:[%s7 + $0x10] sm:$0xff]
  %v2778 = vld [vmem:[%s7 + $0x18] sm:$0xff]
  %v2779 = vld [vmem:[%s7 + $0x20] sm:$0xff]
  %v2780 = vld [vmem:[%s7 + $0x28] sm:$0xff]
  %v2781 = vld [vmem:[%s7 + $0x30] sm:$0xff]
  %v2782 = vld [vmem:[%s7 + $0x38] sm:$0xff]
  %v2783 = vld [vmem:[%s8] sm:$0x1]
  %v2785 = vlaneseq
  %v2786 = vshrl.u32 %v2785, 7
  %v2787 = vsub.s32 0, %v2786
  %v2788 = vrot.slane %v2783, %v2787
  %v2791 = vsel %vm2734, %v2774, 0
  %2793 = vmatprep.subr.mxu0 0.0
  %2794 = vmatpush1.msra.mxu0 0.0
  %2795 = vmatprep.subr.mxu0 0.0
  %2796 = vmatpush1.msra.mxu0 0.0
  %2797 = vmatprep.subr.mxu0 0.0
  %2798 = vmatpush1.msra.mxu0 0.0
  %2799 = vmatprep.subr.mxu0 0.0
  %2800 = vmatpush1.msra.mxu0 0.0
  %2801 = vmatprep.subr.mxu0 0.0
  %2802 = vmatpush1.msra.mxu0 0.0
  %2803 = vmatprep.subr.mxu0 0.0
  %2804 = vmatpush1.msra.mxu0 0.0
  %2805 = vmatprep.subr.mxu0 0.0
  %2806 = vmatpush1.msra.mxu0 0.0
  %2807 = vmatprep.subr.mxu0 0.0
  %2808 = vmatpush1.msra.mxu0 0.0
  %2809 = vmatprep.subr.mxu0 0.0
  %2810 = vmatpush1.msra.mxu0 %v2782
  %2811 = vmatprep.subr.mxu0 0.0
  %2812 = vmatpush1.msra.mxu0 %v2781
  %2813 = vmatprep.subr.mxu0 0.0
  %2814 = vmatpush1.msra.mxu0 %v2780
  %2815 = vmatprep.subr.mxu0 0.0
  %2816 = vmatpush1.msra.mxu0 %v2779
  %2817 = vmatprep.subr.mxu0 0.0
  %2818 = vmatpush1.msra.mxu0 %v2778
  %2819 = vmatprep.subr.mxu0 0.0
  %2820 = vmatpush1.msra.mxu0 %v2777
  %2821 = vmatprep.subr.mxu0 0.0
  %2822 = vmatpush1.msra.mxu0 %v2776
  %2823 = vmatprep.subr.mxu0 0.0
  %2824 = vmatpush1.msra.mxu0 %v2775
  %2825 = vmatprep.subr.mxu0 0.0
  %2826 = vmatpush2.msra.mxu0 0.0
  %2827 = vmatprep.subr.mxu0 0.0
  %2828 = vmatpush2.msra.mxu0 0.0
  %2829 = vmatprep.subr.mxu0 0.0
  %2830 = vmatpush2.msra.mxu0 0.0
  %2831 = vmatprep.subr.mxu0 0.0
  %2832 = vmatpush2.msra.mxu0 0.0
  %2833 = vmatprep.subr.mxu0 0.0
  %2834 = vmatpush2.msra.mxu0 0.0
  %2835 = vmatprep.subr.mxu0 0.0
  %2836 = vmatpush2.msra.mxu0 0.0
  %2837 = vmatprep.subr.mxu0 0.0
  %2838 = vmatpush2.msra.mxu0 0.0
  %2839 = vmatprep.subr.mxu0 0.0
  %2840 = vmatpush2.msra.mxu0 0.0
  %2841 = vmatprep.subr.mxu0 0.0
  %2842 = vmatpush2.msra.mxu0 0.0
  %2843 = vmatprep.subr.mxu0 0.0
  %2844 = vmatpush2.msra.mxu0 0.0
  %2845 = vmatprep.subr.mxu0 0.0
  %2846 = vmatpush2.msra.mxu0 0.0
  %2847 = vmatprep.subr.mxu0 0.0
  %2848 = vmatpush2.msra.mxu0 0.0
  %2849 = vmatprep.subr.mxu0 0.0
  %2850 = vmatpush2.msra.mxu0 0.0
  %2851 = vmatprep.subr.mxu0 0.0
  %2852 = vmatpush2.msra.mxu0 0.0
  %2853 = vmatprep.subr.mxu0 0.0
  %2854 = vmatpush2.msra.mxu0 0.0
  %2855 = vmatprep.subr.mxu0 0.0
  %2856 = vmatpush2.msra.mxu0 0.0
  %2857 = vmatprep.mubr.f32.mxu0 0.0
  %2858 = vmatmul.mubr.f32.gmra.mxu0 %v2791
  %v2859 = vpop.f32.mrf.mxu0
  %v2860 = vadd.f32 %v2788, %v2859
  %v2861 = vpop.f32.mrf.mxu0
  %2862 = vdwg.mxu0
  %vm2863 = vcmask 64512
  %2864 = vst.msk [vmem:[%s9] sm:$0xff] %vm2863, %v2860
  // Predicated region
  $region38: #{affine_localizer_forward.1} parent=0 // pred_check
    _
  $region39: #{affine_localizer_forward.1} parent=0 // pred_check_branch
    %2866 = sbr.rel (0) target = $region41
  $region40: #{affine_localizer_forward.1} parent=0 // pred_region
    _
  $region41: #{affine_localizer_forward.1} parent=0 // pred_fallthru
    _
  // Predicated region
  $region42: #{affine_localizer_forward.1} parent=0 // pred_check
    _
  $region43: #{affine_localizer_forward.1} parent=0 // pred_check_branch
    %2868 = sbr.rel (0) target = $region45
  $region44: #{affine_localizer_forward.1} parent=0 // pred_region
    _
  $region45: #{affine_localizer_forward.1} parent=0 // pred_fallthru
    _

</llo_original>
